<compile_context>
chip_gen: v6e
topology: v6e:2x2x1
jax: 0.10.0
libtpu: 0.0.40
codegen_flags: <defaults>
</compile_context>

<pallas_src>
import jax
import jax.numpy as jnp
import numpy as np
from jax import lax
from jax.experimental import pallas as pl
from jax.experimental.pallas import tpu as pltpu


def _round_up(a, m):
    return (a + m - 1) // m * m


def conv2d_recon_forward(x_nchw, weights_hwio, biases, padding):
    """Apply all n_tasks convolutions to the same input (single-input branch).

    x_nchw:       (N, Cin, H, W)                 float32
    weights_hwio: (n_tasks, KH, KW, Cin, Cout)
    biases:       (n_tasks, Cout)
    returns: list of n_tasks arrays, each (N, Cout, Ho, Wo)  (NCHW, like PyTorch)
    """
    n_tasks, KH, KW, Cin, Cout = weights_hwio.shape
    N, _, H, W = x_nchw.shape
    Hp, Wp = H + 2 * padding, W + 2 * padding
    Ho, Wo = Hp - KH + 1, Wp - KW + 1          # stride=1, dilation=1
    TC = n_tasks * Cout

    # Flat-spatial layout: flat index of (n, h, w) in the padded input is
    #   base = (n*Hp + h)*Wp + w
    # and tap (kh, kw) of output base reads input index base + kh*Wp + kw.
    L = N * Hp * Wp                                  # total padded positions
    max_off = (KH - 1) * Wp + (KW - 1)               # largest tap offset
    Lb_needed = (N - 1) * Hp * Wp + (Ho - 1) * Wp + Wo   # max valid base + 1
    Lb = _round_up(Lb_needed, 128)                   # lane-dense output width
    Lpad = _round_up(max(L, Lb + max_off), 128)      # lane-dense input width

    # ---- cheap wrapper glue: channels-first flat layout, read ONCE ---------
    xp = jnp.transpose(x_nchw, (1, 0, 2, 3))                     # (Cin, N, H, W)
    xp = jnp.pad(xp, ((0, 0), (0, 0),
                      (padding, padding), (padding, padding)))   # (Cin, N, Hp, Wp)
    xflat = xp.reshape(Cin, L)
    xflat = jnp.pad(xflat, ((0, 0), (0, Lpad - L))).astype(jnp.bfloat16)

    # Per-tap weights: w_taps[kh*KW+kw, t*Cout+c, ci] = weights[t, kh, kw, ci, c]
    w_taps = jnp.transpose(weights_hwio, (1, 2, 0, 4, 3)).reshape(KH * KW, TC, Cin)
    w_taps = w_taps.astype(jnp.bfloat16)
    b2 = biases.reshape(TC, 1).astype(jnp.float32)

    tap_offsets = tuple(kh * Wp + kw for kh in range(KH) for kw in range(KW))

    def kernel(x_ref, w_ref, b_ref, o_ref):
        # x_ref: (Cin, Lpad) bf16  flat padded input
        # w_ref: (KH*KW, TC, Cin) bf16
        # b_ref: (TC, 1) f32
        # o_ref: (TC, Lb) f32
        xf = x_ref[...]
        # init accumulator with the broadcast bias -> epilogue is a pure cast
        acc = jnp.broadcast_to(b_ref[...], (TC, Lb))
        # KH*KW shifted-slice tap matmuls, accumulated in f32 (fits in vregs).
        for tap, off in enumerate(tap_offsets):          # static, unrolled
            x_tap = xf[:, off:off + Lb]                  # (Cin, Lb) lane-shifted view
            acc = acc + jnp.dot(w_ref[tap], x_tap,
                                preferred_element_type=jnp.float32)
        o_ref[...] = acc.astype(o_ref.dtype)

    cost = pl.CostEstimate(
        flops=2 * TC * KH * KW * Cin * Lb,
        transcendentals=0,
        bytes_accessed=(Cin * Lpad * 2 + KH * KW * TC * Cin * 2
                        + TC * 4 + TC * Lb * 4))

    out_flat = pl.pallas_call(
        kernel,
        out_shape=jax.ShapeDtypeStruct((TC, Lb), x_nchw.dtype),
        grid_spec=pltpu.PrefetchScalarGridSpec(
            num_scalar_prefetch=0,
            grid=(1,),                                   # single step: overhead paid once
            in_specs=[
                pl.BlockSpec((Cin, Lpad), lambda i: (0, 0)),
                pl.BlockSpec((KH * KW, TC, Cin), lambda i: (0, 0, 0)),
                pl.BlockSpec((TC, 1), lambda i: (0, 0)),
            ],
            out_specs=pl.BlockSpec((TC, Lb), lambda i: (0, 0)),
        ),
        compiler_params=pltpu.CompilerParams(
            dimension_semantics=("arbitrary",)),
        cost_estimate=cost,
    )(xflat, w_taps, b2)

    # Un-flatten: restore the full padded grid, drop garbage columns (bases
    # that straddle a row/batch boundary) and the H/W padding positions.
    if Lb >= L:
        out_full = out_flat[:, :L]
    else:
        out_full = jnp.pad(out_flat, ((0, 0), (0, L - Lb)))
    out5 = out_full.reshape(n_tasks, Cout, N, Hp, Wp)[:, :, :, :Ho, :Wo]
    out5 = jnp.transpose(out5, (0, 2, 1, 3, 4))          # (n_tasks, N, Cout, Ho, Wo)
    return [out5[t] for t in range(n_tasks)]


def _reference_conv(x_nchw, weights_hwio, biases, padding):
    """Pure-JAX reference (lax conv) for correctness checking."""
    x = jnp.transpose(x_nchw, (0, 2, 3, 1))  # NHWC
    outs = []
    for t in range(weights_hwio.shape[0]):
        o = lax.conv_general_dilated(
            x, weights_hwio[t],
            window_strides=(1, 1),
            padding=[(padding, padding), (padding, padding)],
            dimension_numbers=("NHWC", "HWIO", "NHWC"))
        o = o + biases[t][None, None, None, :]
        outs.append(jnp.transpose(o, (0, 3, 1, 2)))  # back to NCHW
    return outs


if __name__ == "__main__":
    # Module config: Conv2d_recon(in_channels=4, out_channels=8, kernel_size=3,
    #                             stride=1, padding=1, bias=True, n_tasks=2)
    in_channels, out_channels, kernel_size, padding, n_tasks = 4, 8, 3, 1, 2
    N, H, W = 2, 16, 16

    key = jax.random.PRNGKey(0)
    kx, kw, kb = jax.random.split(key, 3)

    x = jax.random.normal(kx, (N, in_channels, H, W), dtype=jnp.float32)
    # Deterministic synthetic parameters (one Conv2d per task), HWIO layout.
    fan_in = in_channels * kernel_size * kernel_size
    bound = 1.0 / np.sqrt(fan_in)
    weights = jax.random.uniform(
        kw, (n_tasks, kernel_size, kernel_size, in_channels, out_channels),
        minval=-bound, maxval=bound, dtype=jnp.float32)
    biases = jax.random.uniform(
        kb, (n_tasks, out_channels), minval=-bound, maxval=bound,
        dtype=jnp.float32)

    outs = conv2d_recon_forward(x, weights, biases, padding)
    outs = [jax.block_until_ready(o) for o in outs]

    refs = _reference_conv(x, weights, biases, padding)
    for o, r in zip(outs, refs):
        assert o.shape == (N, out_channels, H, W), o.shape
        # bf16 MXU inputs (f32 accumulation) -> loosened tolerance per review.
        np.testing.assert_allclose(np.asarray(o), np.asarray(r),
                                   rtol=1e-2, atol=2e-2)

    print("KERNEL_OK")
</pallas_src>

<mosaic_0001>
module attributes {stable_mosaic.version = 11 : i64} {
  func.func @kernel(%arg0: i32, %arg1: memref<4x768xbf16, #tpu.memory_space<vmem>>, %arg2: memref<9x16x4xbf16, #tpu.memory_space<vmem>>, %arg3: memref<16x1xf32, #tpu.memory_space<vmem>>, %arg4: memref<16x640xf32, #tpu.memory_space<vmem>>) attributes {dimension_semantics = [#tpu.dimension_semantics<arbitrary>], iteration_bounds = array<i64: 1>, scalar_prefetch = 0 : i64, scratch_operands = 0 : i64, tpu.core_type = #tpu.core_type<tc>, window_params = [{pipeline_mode = #tpu.pipeline_mode<synchronous>, transform_indices = @transform_0, window_bounds = array<i64: 4, 768>}, {pipeline_mode = #tpu.pipeline_mode<synchronous>, transform_indices = @transform_1, window_bounds = array<i64: 9, 16, 4>}, {pipeline_mode = #tpu.pipeline_mode<synchronous>, transform_indices = @transform_2, window_bounds = array<i64: 16, 1>}, {pipeline_mode = #tpu.pipeline_mode<synchronous>, transform_indices = @transform_3, window_bounds = array<i64: 16, 640>}]} {
    %c0 = arith.constant 0 : index
    %c0_0 = arith.constant 0 : index
    %0 = vector.load %arg1[%c0, %c0_0] : memref<4x768xbf16, #tpu.memory_space<vmem>>, vector<4x768xbf16>
    %c0_1 = arith.constant 0 : index
    %c0_2 = arith.constant 0 : index
    %1 = vector.load %arg3[%c0_1, %c0_2] : memref<16x1xf32, #tpu.memory_space<vmem>>, vector<16x1xf32>
    %2 = vector.shape_cast %1 : vector<16x1xf32> to vector<16x1xf32>
    %3 = vector.broadcast %2 : vector<16x1xf32> to vector<16x640xf32>
    %4 = vector.extract_strided_slice %0 {offsets = [0, 0], sizes = [4, 640], strides = [1, 1]} : vector<4x768xbf16> to vector<4x640xbf16>
    %c0_3 = arith.constant 0 : index
    %c0_4 = arith.constant 0 : index
    %c0_5 = arith.constant 0 : index
    %5 = vector.load %arg2[%c0_3, %c0_4, %c0_5] : memref<9x16x4xbf16, #tpu.memory_space<vmem>>, vector<1x16x4xbf16>
    %6 = vector.shape_cast %5 : vector<1x16x4xbf16> to vector<16x4xbf16>
    %cst = arith.constant dense<0.000000e+00> : vector<16x640xf32>
    %7 = tpu.matmul %6, %4, %cst {dimension_numbers = #tpu.dot_dimension_numbers<[1], [0], [0], [1], [0, 0, 1, 1], [], []>} : vector<16x4xbf16>, vector<4x640xbf16>, vector<16x640xf32> -> vector<16x640xf32>
    %8 = arith.addf %3, %7 : vector<16x640xf32>
    %9 = vector.extract_strided_slice %0 {offsets = [0, 1], sizes = [4, 640], strides = [1, 1]} : vector<4x768xbf16> to vector<4x640xbf16>
    %c1 = arith.constant 1 : index
    %c0_6 = arith.constant 0 : index
    %c0_7 = arith.constant 0 : index
    %10 = vector.load %arg2[%c1, %c0_6, %c0_7] : memref<9x16x4xbf16, #tpu.memory_space<vmem>>, vector<1x16x4xbf16>
    %11 = vector.shape_cast %10 : vector<1x16x4xbf16> to vector<16x4xbf16>
    %cst_8 = arith.constant dense<0.000000e+00> : vector<16x640xf32>
    %12 = tpu.matmul %11, %9, %cst_8 {dimension_numbers = #tpu.dot_dimension_numbers<[1], [0], [0], [1], [0, 0, 1, 1], [], []>} : vector<16x4xbf16>, vector<4x640xbf16>, vector<16x640xf32> -> vector<16x640xf32>
    %13 = arith.addf %8, %12 : vector<16x640xf32>
    %14 = vector.extract_strided_slice %0 {offsets = [0, 2], sizes = [4, 640], strides = [1, 1]} : vector<4x768xbf16> to vector<4x640xbf16>
    %c2 = arith.constant 2 : index
    %c0_9 = arith.constant 0 : index
    %c0_10 = arith.constant 0 : index
    %15 = vector.load %arg2[%c2, %c0_9, %c0_10] : memref<9x16x4xbf16, #tpu.memory_space<vmem>>, vector<1x16x4xbf16>
    %16 = vector.shape_cast %15 : vector<1x16x4xbf16> to vector<16x4xbf16>
    %cst_11 = arith.constant dense<0.000000e+00> : vector<16x640xf32>
    %17 = tpu.matmul %16, %14, %cst_11 {dimension_numbers = #tpu.dot_dimension_numbers<[1], [0], [0], [1], [0, 0, 1, 1], [], []>} : vector<16x4xbf16>, vector<4x640xbf16>, vector<16x640xf32> -> vector<16x640xf32>
    %18 = arith.addf %13, %17 : vector<16x640xf32>
    %19 = vector.extract_strided_slice %0 {offsets = [0, 18], sizes = [4, 640], strides = [1, 1]} : vector<4x768xbf16> to vector<4x640xbf16>
    %c3 = arith.constant 3 : index
    %c0_12 = arith.constant 0 : index
    %c0_13 = arith.constant 0 : index
    %20 = vector.load %arg2[%c3, %c0_12, %c0_13] : memref<9x16x4xbf16, #tpu.memory_space<vmem>>, vector<1x16x4xbf16>
    %21 = vector.shape_cast %20 : vector<1x16x4xbf16> to vector<16x4xbf16>
    %cst_14 = arith.constant dense<0.000000e+00> : vector<16x640xf32>
    %22 = tpu.matmul %21, %19, %cst_14 {dimension_numbers = #tpu.dot_dimension_numbers<[1], [0], [0], [1], [0, 0, 1, 1], [], []>} : vector<16x4xbf16>, vector<4x640xbf16>, vector<16x640xf32> -> vector<16x640xf32>
    %23 = arith.addf %18, %22 : vector<16x640xf32>
    %24 = vector.extract_strided_slice %0 {offsets = [0, 19], sizes = [4, 640], strides = [1, 1]} : vector<4x768xbf16> to vector<4x640xbf16>
    %c4 = arith.constant 4 : index
    %c0_15 = arith.constant 0 : index
    %c0_16 = arith.constant 0 : index
    %25 = vector.load %arg2[%c4, %c0_15, %c0_16] : memref<9x16x4xbf16, #tpu.memory_space<vmem>>, vector<1x16x4xbf16>
    %26 = vector.shape_cast %25 : vector<1x16x4xbf16> to vector<16x4xbf16>
    %cst_17 = arith.constant dense<0.000000e+00> : vector<16x640xf32>
    %27 = tpu.matmul %26, %24, %cst_17 {dimension_numbers = #tpu.dot_dimension_numbers<[1], [0], [0], [1], [0, 0, 1, 1], [], []>} : vector<16x4xbf16>, vector<4x640xbf16>, vector<16x640xf32> -> vector<16x640xf32>
    %28 = arith.addf %23, %27 : vector<16x640xf32>
    %29 = vector.extract_strided_slice %0 {offsets = [0, 20], sizes = [4, 640], strides = [1, 1]} : vector<4x768xbf16> to vector<4x640xbf16>
    %c5 = arith.constant 5 : index
    %c0_18 = arith.constant 0 : index
    %c0_19 = arith.constant 0 : index
    %30 = vector.load %arg2[%c5, %c0_18, %c0_19] : memref<9x16x4xbf16, #tpu.memory_space<vmem>>, vector<1x16x4xbf16>
    %31 = vector.shape_cast %30 : vector<1x16x4xbf16> to vector<16x4xbf16>
    %cst_20 = arith.constant dense<0.000000e+00> : vector<16x640xf32>
    %32 = tpu.matmul %31, %29, %cst_20 {dimension_numbers = #tpu.dot_dimension_numbers<[1], [0], [0], [1], [0, 0, 1, 1], [], []>} : vector<16x4xbf16>, vector<4x640xbf16>, vector<16x640xf32> -> vector<16x640xf32>
    %33 = arith.addf %28, %32 : vector<16x640xf32>
    %34 = vector.extract_strided_slice %0 {offsets = [0, 36], sizes = [4, 640], strides = [1, 1]} : vector<4x768xbf16> to vector<4x640xbf16>
    %c6 = arith.constant 6 : index
    %c0_21 = arith.constant 0 : index
    %c0_22 = arith.constant 0 : index
    %35 = vector.load %arg2[%c6, %c0_21, %c0_22] : memref<9x16x4xbf16, #tpu.memory_space<vmem>>, vector<1x16x4xbf16>
    %36 = vector.shape_cast %35 : vector<1x16x4xbf16> to vector<16x4xbf16>
    %cst_23 = arith.constant dense<0.000000e+00> : vector<16x640xf32>
    %37 = tpu.matmul %36, %34, %cst_23 {dimension_numbers = #tpu.dot_dimension_numbers<[1], [0], [0], [1], [0, 0, 1, 1], [], []>} : vector<16x4xbf16>, vector<4x640xbf16>, vector<16x640xf32> -> vector<16x640xf32>
    %38 = arith.addf %33, %37 : vector<16x640xf32>
    %39 = vector.extract_strided_slice %0 {offsets = [0, 37], sizes = [4, 640], strides = [1, 1]} : vector<4x768xbf16> to vector<4x640xbf16>
    %c7 = arith.constant 7 : index
    %c0_24 = arith.constant 0 : index
    %c0_25 = arith.constant 0 : index
    %40 = vector.load %arg2[%c7, %c0_24, %c0_25] : memref<9x16x4xbf16, #tpu.memory_space<vmem>>, vector<1x16x4xbf16>
    %41 = vector.shape_cast %40 : vector<1x16x4xbf16> to vector<16x4xbf16>
    %cst_26 = arith.constant dense<0.000000e+00> : vector<16x640xf32>
    %42 = tpu.matmul %41, %39, %cst_26 {dimension_numbers = #tpu.dot_dimension_numbers<[1], [0], [0], [1], [0, 0, 1, 1], [], []>} : vector<16x4xbf16>, vector<4x640xbf16>, vector<16x640xf32> -> vector<16x640xf32>
    %43 = arith.addf %38, %42 : vector<16x640xf32>
    %44 = vector.extract_strided_slice %0 {offsets = [0, 38], sizes = [4, 640], strides = [1, 1]} : vector<4x768xbf16> to vector<4x640xbf16>
    %c8 = arith.constant 8 : index
    %c0_27 = arith.constant 0 : index
    %c0_28 = arith.constant 0 : index
    %45 = vector.load %arg2[%c8, %c0_27, %c0_28] : memref<9x16x4xbf16, #tpu.memory_space<vmem>>, vector<1x16x4xbf16>
    %46 = vector.shape_cast %45 : vector<1x16x4xbf16> to vector<16x4xbf16>
    %cst_29 = arith.constant dense<0.000000e+00> : vector<16x640xf32>
    %47 = tpu.matmul %46, %44, %cst_29 {dimension_numbers = #tpu.dot_dimension_numbers<[1], [0], [0], [1], [0, 0, 1, 1], [], []>} : vector<16x4xbf16>, vector<4x640xbf16>, vector<16x640xf32> -> vector<16x640xf32>
    %48 = arith.addf %43, %47 : vector<16x640xf32>
    %c0_30 = arith.constant 0 : index
    %c0_31 = arith.constant 0 : index
    %49 = vector.load %arg4[%c0_30, %c0_31] : memref<16x640xf32, #tpu.memory_space<vmem>>, vector<16x640xf32>
    tpu.vector_store %arg4[%c0_30, %c0_31], %48 {strides = array<i32>} : memref<16x640xf32, #tpu.memory_space<vmem>>, vector<16x640xf32>,
    return
  }
  func.func @transform_0(%arg0: i32) -> (i32, i32) {
    %c0_i32 = arith.constant 0 : i32
    %c0_i32_0 = arith.constant 0 : i32
    %c0_i32_1 = arith.constant 0 : i32
    return %c0_i32, %c0_i32_0 : i32, i32
  }
  func.func @transform_1(%arg0: i32) -> (i32, i32, i32) {
    %c0_i32 = arith.constant 0 : i32
    %c0_i32_0 = arith.constant 0 : i32
    %c0_i32_1 = arith.constant 0 : i32
    %c0_i32_2 = arith.constant 0 : i32
    return %c0_i32, %c0_i32_0, %c0_i32_1 : i32, i32, i32
  }
  func.func @transform_2(%arg0: i32) -> (i32, i32) {
    %c0_i32 = arith.constant 0 : i32
    %c0_i32_0 = arith.constant 0 : i32
    %c0_i32_1 = arith.constant 0 : i32
    return %c0_i32, %c0_i32_0 : i32, i32
  }
  func.func @transform_3(%arg0: i32) -> (i32, i32) {
    %c0_i32 = arith.constant 0 : i32
    %c0_i32_0 = arith.constant 0 : i32
    %c0_i32_1 = arith.constant 0 : i32
    return %c0_i32, %c0_i32_0 : i32, i32
  }
}

</mosaic_0001>

<llo_original>
// kernel: tpu_custom_call.1
$region0: #{tpu_custom_call.1}
  #allocation0 [shape = 'u32[]', space=smem, size = 0x4, offset = 0x4, fixed_abs, tag = 'smem constant byte address 0x4 - core index']
  #allocation1 [shape = 'u32[144,128]{1,0:T(1,128)}', space=vmem, size = 0x12000, scoped, tag = 'internal scratch']
  %s0 = inlined_call_operand.vmem [shape: bf16[4,768], index: 0, kind: input, shape index: {}]
  %s1 = inlined_call_operand.vmem [shape: bf16[9,16,4], index: 1, kind: input, shape index: {}]
  %s2 = inlined_call_operand.vmem [shape: f32[16,1], index: 2, kind: input, shape index: {}]
  %s3 = inlined_call_operand.hbm [shape: f32[16,640], index: 3, kind: output, shape index: {}]
  %s4 = sld [smem:[#allocation0]]
  $region22: #{tpu_custom_call.1} parent=0
    _
  %s6 = ssub.s32 1, %s4
  %s7 = scalar_select 0, %s6, %s4
  $region1: #{tpu_custom_call.1} parent=0
    #allocation2 [shape = 'u8[40960]{0}', space=vmem, size = 0xa000, scoped, tag = 'output window, operand 0, single buffered']
    #allocation3 [shape = 's32[1]{0}', space=sflag, size = 0x4, scoped, tag = 'scoped memory for tpu_custom_call.1']
    %8 = vsyncpa [#allocation3], 0
    // Predicated region
    $region2: #{tpu_custom_call.1} parent=1 // pred_check
      _
    $region3: #{tpu_custom_call.1} parent=1 // pred_check_branch
      %10 = sbr.rel (0) target = $region5
    $region4: #{tpu_custom_call.1} parent=1 // pred_region
      _
    $region5: #{tpu_custom_call.1} parent=1 // pred_fallthru
      _
    // Predicated region
    $region6: #{tpu_custom_call.1} parent=1 // pred_check
      _
    $region7: #{tpu_custom_call.1} parent=1 // pred_check_branch
      %12 = sbr.rel (0) target = $region9
    $region8: #{tpu_custom_call.1} parent=1 // pred_region
      _
    $region9: #{tpu_custom_call.1} parent=1 // pred_fallthru
      _
    // Predicated region
    $region10: #{tpu_custom_call.1} parent=1 // pred_check
      _
    $region11: #{tpu_custom_call.1} parent=1 // pred_check_branch
      %14 = sbr.rel (0) target = $region13
    $region12: #{tpu_custom_call.1} parent=1 // pred_region
      _
    $region13: #{tpu_custom_call.1} parent=1 // pred_fallthru
      _
    %v16 = vld [vmem:[%s0] sm:$0xff]
    %v17 = vld [vmem:[%s0 + $0x8] sm:$0xf]
    %v18 = vld [vmem:[%s2] sm:$0xff]
    %v19 = vld [vmem:[%s2 + $0x8] sm:$0xff]
    %21 = vset.pattern.permute.xlu0 0
    %22 = vperm.xlu0 %21, %v18
    %v23 = vpop.permute.xlu0 %22
    %26 = vset.pattern.permute.xlu0 0
    %27 = vperm.xlu0 %26, %v19
    %v28 = vpop.permute.xlu0 %27
    %v30 = vld [vmem:[%s1] sm:$0xf]
    %v31 = vld [vmem:[%s1 + $0x4] sm:$0xf]
    %v34 = vunpack.c.l.b16 %v30
    %v35 = vunpack.c.l.b16 %v31
    %v36 = vpack.c.b16 %v35, %v34
    %v39 = vcombine.high %v16, %v16
    %v41 = vunpack.c.l.s4 1983009808
    %v42 = vunpack.c.0.s8 %v41
    %v43 = vlaneseq
    %v44 = vshrl.u32 %v43, 7
    %v45 = vsub.s32 %v42, %v44
    %v46 = vrot.slane %v16, %v45
    %v48 = vunpack.c.l.s4 1983009808
    %v49 = vunpack.c.0.s8 %v48
    %v50 = vlaneseq
    %v51 = vshrl.u32 %v50, 7
    %v52 = vsub.s32 %v49, %v51
    %v53 = vrot.slane %v39, %v52
    %v54 = vcombine.high %v46, %v46
    %v55 = vcombine.high %v53, %v53
    %v57 = vunpack.c.l.s4 1983009808
    %v58 = vunpack.c.0.s8 %v57
    %v59 = vlaneseq
    %v60 = vshrl.u32 %v59, 7
    %v61 = vsub.s32 %v58, %v60
    %v62 = vrot.slane %v17, %v61
    %vm63 = vcmask 31744
    %v65 = vsel %vm63, %v36, 0
    %vm67 = vcmask 1041408
    %v69 = vsel %vm67, %v46, 0
    %v72 = vsel %vm67, %v54, 0
    %v75 = vsel %vm67, %v53, 0
    %v78 = vsel %vm67, %v55, 0
    %v81 = vsel %vm67, %v62, 0
    %83 = vmatprep.subr.bf16.mxu0 0
    %84 = vmatpush1.bf16.msra.mxu0 0
    %85 = vmatprep.subr.bf16.mxu0 0
    %86 = vmatpush1.bf16.msra.mxu0 0
    %87 = vmatprep.subr.bf16.mxu0 0
    %88 = vmatpush1.bf16.msra.mxu0 0
    %89 = vmatprep.subr.bf16.mxu0 0
    %90 = vmatpush1.bf16.msra.mxu0 0
    %91 = vmatprep.subr.bf16.mxu0 0
    %92 = vmatpush1.bf16.msra.mxu0 0
    %93 = vmatprep.subr.bf16.mxu0 0
    %94 = vmatpush1.bf16.msra.mxu0 0
    %95 = vmatprep.subr.bf16.mxu0 0
    %96 = vmatpush1.bf16.msra.mxu0 0
    %97 = vmatprep.subr.bf16.mxu0 %v72
    %98 = vmatpush1.bf16.msra.mxu0 %v69
    %99 = vmatprep.subr.bf16.mxu0 0
    %100 = vmatpush2.bf16.msra.mxu0 0
    %101 = vmatprep.subr.bf16.mxu0 0
    %102 = vmatpush2.bf16.msra.mxu0 0
    %103 = vmatprep.subr.bf16.mxu0 0
    %104 = vmatpush2.bf16.msra.mxu0 0
    %105 = vmatprep.subr.bf16.mxu0 0
    %106 = vmatpush2.bf16.msra.mxu0 0
    %107 = vmatprep.subr.bf16.mxu0 0
    %108 = vmatpush2.bf16.msra.mxu0 0
    %109 = vmatprep.subr.bf16.mxu0 0
    %110 = vmatpush2.bf16.msra.mxu0 0
    %111 = vmatprep.subr.bf16.mxu0 0
    %112 = vmatpush2.bf16.msra.mxu0 0
    %113 = vmatprep.subr.bf16.mxu0 0
    %114 = vmatpush2.bf16.msra.mxu0 0
    %115 = vmatprep.mubr.bf16.mxu0 0
    %116 = vmatmul.mubr.bf16.gmra.mxu0 %v65
    %v117 = vpop.f32.mrf.mxu0
    %v118 = vadd.f32 0.0, %v117
    %v119 = vpop.f32.mrf.mxu0
    %v120 = vadd.f32 0.0, %v119
    %v121 = vpop.f32.mrf.mxu0
    %v122 = vadd.f32 0.0, %v121
    %v123 = vpop.f32.mrf.mxu0
    %v124 = vadd.f32 0.0, %v123
    %125 = vdwg.mxu0
    %126 = vmatprep.subr.bf16.mxu0 0
    %127 = vmatpush1.bf16.msra.mxu0 0
    %128 = vmatprep.subr.bf16.mxu0 0
    %129 = vmatpush1.bf16.msra.mxu0 0
    %130 = vmatprep.subr.bf16.mxu0 0
    %131 = vmatpush1.bf16.msra.mxu0 0
    %132 = vmatprep.subr.bf16.mxu0 0
    %133 = vmatpush1.bf16.msra.mxu0 0
    %134 = vmatprep.subr.bf16.mxu0 0
    %135 = vmatpush1.bf16.msra.mxu0 0
    %136 = vmatprep.subr.bf16.mxu0 0
    %137 = vmatpush1.bf16.msra.mxu0 0
    %138 = vmatprep.subr.bf16.mxu0 0
    %139 = vmatpush1.bf16.msra.mxu0 0
    %140 = vmatprep.subr.bf16.mxu0 %v78
    %141 = vmatpush1.bf16.msra.mxu0 %v75
    %142 = vmatprep.subr.bf16.mxu0 0
    %143 = vmatpush2.bf16.msra.mxu0 0
    %144 = vmatprep.subr.bf16.mxu0 0
    %145 = vmatpush2.bf16.msra.mxu0 0
    %146 = vmatprep.subr.bf16.mxu0 0
    %147 = vmatpush2.bf16.msra.mxu0 0
    %148 = vmatprep.subr.bf16.mxu0 0
    %149 = vmatpush2.bf16.msra.mxu0 0
    %150 = vmatprep.subr.bf16.mxu0 0
    %151 = vmatpush2.bf16.msra.mxu0 0
    %152 = vmatprep.subr.bf16.mxu0 0
    %153 = vmatpush2.bf16.msra.mxu0 0
    %154 = vmatprep.subr.bf16.mxu0 0
    %155 = vmatpush2.bf16.msra.mxu0 0
    %156 = vmatprep.subr.bf16.mxu0 0
    %157 = vmatpush2.bf16.msra.mxu0 0
    %158 = vmatprep.mubr.bf16.mxu0 0
    %159 = vmatmul.mubr.bf16.gmra.mxu0 %v65
    %v160 = vpop.f32.mrf.mxu0
    %v161 = vadd.f32 0.0, %v160
    %v162 = vpop.f32.mrf.mxu0
    %v163 = vadd.f32 0.0, %v162
    %v164 = vpop.f32.mrf.mxu0
    %v165 = vadd.f32 0.0, %v164
    %v166 = vpop.f32.mrf.mxu0
    %v167 = vadd.f32 0.0, %v166
    %168 = vdwg.mxu0
    %169 = vmatprep.subr.bf16.mxu0 0
    %170 = vmatpush1.bf16.msra.mxu0 0
    %171 = vmatprep.subr.bf16.mxu0 0
    %172 = vmatpush1.bf16.msra.mxu0 0
    %173 = vmatprep.subr.bf16.mxu0 0
    %174 = vmatpush1.bf16.msra.mxu0 0
    %175 = vmatprep.subr.bf16.mxu0 0
    %176 = vmatpush1.bf16.msra.mxu0 0
    %177 = vmatprep.subr.bf16.mxu0 0
    %178 = vmatpush1.bf16.msra.mxu0 0
    %179 = vmatprep.subr.bf16.mxu0 0
    %180 = vmatpush1.bf16.msra.mxu0 0
    %181 = vmatprep.subr.bf16.mxu0 0
    %182 = vmatpush1.bf16.msra.mxu0 0
    %183 = vmatprep.subr.bf16.mxu0 0
    %184 = vmatpush1.bf16.msra.mxu0 %v81
    %185 = vmatprep.subr.bf16.mxu0 0
    %186 = vmatpush2.bf16.msra.mxu0 0
    %187 = vmatprep.subr.bf16.mxu0 0
    %188 = vmatpush2.bf16.msra.mxu0 0
    %189 = vmatprep.subr.bf16.mxu0 0
    %190 = vmatpush2.bf16.msra.mxu0 0
    %191 = vmatprep.subr.bf16.mxu0 0
    %192 = vmatpush2.bf16.msra.mxu0 0
    %193 = vmatprep.subr.bf16.mxu0 0
    %194 = vmatpush2.bf16.msra.mxu0 0
    %195 = vmatprep.subr.bf16.mxu0 0
    %196 = vmatpush2.bf16.msra.mxu0 0
    %197 = vmatprep.subr.bf16.mxu0 0
    %198 = vmatpush2.bf16.msra.mxu0 0
    %199 = vmatprep.subr.bf16.mxu0 0
    %200 = vmatpush2.bf16.msra.mxu0 0
    %201 = vmatprep.mubr.bf16.mxu0 0
    %202 = vmatmul.mubr.bf16.gmra.mxu0 %v65
    %v203 = vpop.f32.mrf.mxu0
    %v204 = vadd.f32 0.0, %v203
    %v205 = vpop.f32.mrf.mxu0
    %v206 = vpop.f32.mrf.mxu0
    %v207 = vadd.f32 0.0, %v206
    %v208 = vpop.f32.mrf.mxu0
    %209 = vdwg.mxu0
    %v210 = vadd.f32 %v23, %v118
    %v211 = vadd.f32 %v23, %v120
    %v212 = vadd.f32 %v23, %v161
    %v213 = vadd.f32 %v23, %v163
    %v214 = vadd.f32 %v23, %v204
    %v215 = vadd.f32 %v28, %v122
    %v216 = vadd.f32 %v28, %v124
    %v217 = vadd.f32 %v28, %v165
    %v218 = vadd.f32 %v28, %v167
    %v219 = vadd.f32 %v28, %v207
    %s220 = scalar_lea.vmem %s1, 8
    %v221 = vld [vmem:[%s220] sm:$0xf]
    %v222 = vld [vmem:[%s220 + $0x4] sm:$0xf]
    %v225 = vunpack.c.l.b16 %v221
    %v226 = vunpack.c.l.b16 %v222
    %v227 = vpack.c.b16 %v226, %v225
    %v228 = vcombine.high %v62, %v62
    %229 = vrot.lane.b32.xlu0 %v46, 127
    %v230 = vpop.permute.xlu0 %229
    %231 = vrot.lane.b32.xlu0 %v54, 127
    %v232 = vpop.permute.xlu0 %231
    %233 = vrot.lane.b32.xlu0 %v53, 127
    %v234 = vpop.permute.xlu0 %233
    %235 = vrot.lane.b32.xlu0 %v55, 127
    %v236 = vpop.permute.xlu0 %235
    %237 = vrot.lane.b32.xlu0 %v62, 127
    %v238 = vpop.permute.xlu0 %237
    %239 = vrot.lane.b32.xlu0 %v228, 127
    %v240 = vpop.permute.xlu0 %239
    %vm241 = vcmask 1039360
    %v242 = vsel %vm241, %v230, %v232
    %v243 = vsel %vm241, %v232, %v234
    %v244 = vsel %vm241, %v234, %v236
    %v245 = vsel %vm241, %v236, %v238
    %v246 = vsel %vm241, %v238, %v240
    %v248 = vsel %vm63, %v227, 0
    %v251 = vsel %vm67, %v242, 0
    %v254 = vsel %vm67, %v243, 0
    %v257 = vsel %vm67, %v244, 0
    %v260 = vsel %vm67, %v245, 0
    %v263 = vsel %vm67, %v246, 0
    %265 = vmatprep.subr.bf16.mxu0 0
    %266 = vmatpush1.bf16.msra.mxu0 0
    %267 = vmatprep.subr.bf16.mxu0 0
    %268 = vmatpush1.bf16.msra.mxu0 0
    %269 = vmatprep.subr.bf16.mxu0 0
    %270 = vmatpush1.bf16.msra.mxu0 0
    %271 = vmatprep.subr.bf16.mxu0 0
    %272 = vmatpush1.bf16.msra.mxu0 0
    %273 = vmatprep.subr.bf16.mxu0 0
    %274 = vmatpush1.bf16.msra.mxu0 0
    %275 = vmatprep.subr.bf16.mxu0 0
    %276 = vmatpush1.bf16.msra.mxu0 0
    %277 = vmatprep.subr.bf16.mxu0 0
    %278 = vmatpush1.bf16.msra.mxu0 0
    %279 = vmatprep.subr.bf16.mxu0 %v254
    %280 = vmatpush1.bf16.msra.mxu0 %v251
    %281 = vmatprep.subr.bf16.mxu0 0
    %282 = vmatpush2.bf16.msra.mxu0 0
    %283 = vmatprep.subr.bf16.mxu0 0
    %284 = vmatpush2.bf16.msra.mxu0 0
    %285 = vmatprep.subr.bf16.mxu0 0
    %286 = vmatpush2.bf16.msra.mxu0 0
    %287 = vmatprep.subr.bf16.mxu0 0
    %288 = vmatpush2.bf16.msra.mxu0 0
    %289 = vmatprep.subr.bf16.mxu0 0
    %290 = vmatpush2.bf16.msra.mxu0 0
    %291 = vmatprep.subr.bf16.mxu0 0
    %292 = vmatpush2.bf16.msra.mxu0 0
    %293 = vmatprep.subr.bf16.mxu0 0
    %294 = vmatpush2.bf16.msra.mxu0 0
    %295 = vmatprep.subr.bf16.mxu0 0
    %296 = vmatpush2.bf16.msra.mxu0 0
    %297 = vmatprep.mubr.bf16.mxu0 0
    %298 = vmatmul.mubr.bf16.gmra.mxu0 %v248
    %v299 = vpop.f32.mrf.mxu0
    %v300 = vadd.f32 0.0, %v299
    %v301 = vpop.f32.mrf.mxu0
    %v302 = vadd.f32 0.0, %v301
    %v303 = vpop.f32.mrf.mxu0
    %v304 = vadd.f32 0.0, %v303
    %v305 = vpop.f32.mrf.mxu0
    %v306 = vadd.f32 0.0, %v305
    %307 = vdwg.mxu0
    %308 = vmatprep.subr.bf16.mxu0 0
    %309 = vmatpush1.bf16.msra.mxu0 0
    %310 = vmatprep.subr.bf16.mxu0 0
    %311 = vmatpush1.bf16.msra.mxu0 0
    %312 = vmatprep.subr.bf16.mxu0 0
    %313 = vmatpush1.bf16.msra.mxu0 0
    %314 = vmatprep.subr.bf16.mxu0 0
    %315 = vmatpush1.bf16.msra.mxu0 0
    %316 = vmatprep.subr.bf16.mxu0 0
    %317 = vmatpush1.bf16.msra.mxu0 0
    %318 = vmatprep.subr.bf16.mxu0 0
    %319 = vmatpush1.bf16.msra.mxu0 0
    %320 = vmatprep.subr.bf16.mxu0 0
    %321 = vmatpush1.bf16.msra.mxu0 0
    %322 = vmatprep.subr.bf16.mxu0 %v260
    %323 = vmatpush1.bf16.msra.mxu0 %v257
    %324 = vmatprep.subr.bf16.mxu0 0
    %325 = vmatpush2.bf16.msra.mxu0 0
    %326 = vmatprep.subr.bf16.mxu0 0
    %327 = vmatpush2.bf16.msra.mxu0 0
    %328 = vmatprep.subr.bf16.mxu0 0
    %329 = vmatpush2.bf16.msra.mxu0 0
    %330 = vmatprep.subr.bf16.mxu0 0
    %331 = vmatpush2.bf16.msra.mxu0 0
    %332 = vmatprep.subr.bf16.mxu0 0
    %333 = vmatpush2.bf16.msra.mxu0 0
    %334 = vmatprep.subr.bf16.mxu0 0
    %335 = vmatpush2.bf16.msra.mxu0 0
    %336 = vmatprep.subr.bf16.mxu0 0
    %337 = vmatpush2.bf16.msra.mxu0 0
    %338 = vmatprep.subr.bf16.mxu0 0
    %339 = vmatpush2.bf16.msra.mxu0 0
    %340 = vmatprep.mubr.bf16.mxu0 0
    %341 = vmatmul.mubr.bf16.gmra.mxu0 %v248
    %v342 = vpop.f32.mrf.mxu0
    %v343 = vadd.f32 0.0, %v342
    %v344 = vpop.f32.mrf.mxu0
    %v345 = vadd.f32 0.0, %v344
    %v346 = vpop.f32.mrf.mxu0
    %v347 = vadd.f32 0.0, %v346
    %v348 = vpop.f32.mrf.mxu0
    %v349 = vadd.f32 0.0, %v348
    %350 = vdwg.mxu0
    %351 = vmatprep.subr.bf16.mxu0 0
    %352 = vmatpush1.bf16.msra.mxu0 0
    %353 = vmatprep.subr.bf16.mxu0 0
    %354 = vmatpush1.bf16.msra.mxu0 0
    %355 = vmatprep.subr.bf16.mxu0 0
    %356 = vmatpush1.bf16.msra.mxu0 0
    %357 = vmatprep.subr.bf16.mxu0 0
    %358 = vmatpush1.bf16.msra.mxu0 0
    %359 = vmatprep.subr.bf16.mxu0 0
    %360 = vmatpush1.bf16.msra.mxu0 0
    %361 = vmatprep.subr.bf16.mxu0 0
    %362 = vmatpush1.bf16.msra.mxu0 0
    %363 = vmatprep.subr.bf16.mxu0 0
    %364 = vmatpush1.bf16.msra.mxu0 0
    %365 = vmatprep.subr.bf16.mxu0 0
    %366 = vmatpush1.bf16.msra.mxu0 %v263
    %367 = vmatprep.subr.bf16.mxu0 0
    %368 = vmatpush2.bf16.msra.mxu0 0
    %369 = vmatprep.subr.bf16.mxu0 0
    %370 = vmatpush2.bf16.msra.mxu0 0
    %371 = vmatprep.subr.bf16.mxu0 0
    %372 = vmatpush2.bf16.msra.mxu0 0
    %373 = vmatprep.subr.bf16.mxu0 0
    %374 = vmatpush2.bf16.msra.mxu0 0
    %375 = vmatprep.subr.bf16.mxu0 0
    %376 = vmatpush2.bf16.msra.mxu0 0
    %377 = vmatprep.subr.bf16.mxu0 0
    %378 = vmatpush2.bf16.msra.mxu0 0
    %379 = vmatprep.subr.bf16.mxu0 0
    %380 = vmatpush2.bf16.msra.mxu0 0
    %381 = vmatprep.subr.bf16.mxu0 0
    %382 = vmatpush2.bf16.msra.mxu0 0
    %383 = vmatprep.mubr.bf16.mxu0 0
    %384 = vmatmul.mubr.bf16.gmra.mxu0 %v248
    %v385 = vpop.f32.mrf.mxu0
    %v386 = vadd.f32 0.0, %v385
    %v387 = vpop.f32.mrf.mxu0
    %v388 = vpop.f32.mrf.mxu0
    %v389 = vadd.f32 0.0, %v388
    %v390 = vpop.f32.mrf.mxu0
    %391 = vdwg.mxu0
    %v392 = vadd.f32 %v210, %v300
    %v393 = vadd.f32 %v211, %v302
    %v394 = vadd.f32 %v212, %v343
    %v395 = vadd.f32 %v213, %v345
    %v396 = vadd.f32 %v214, %v386
    %v397 = vadd.f32 %v215, %v304
    %v398 = vadd.f32 %v216, %v306
    %v399 = vadd.f32 %v217, %v347
    %v400 = vadd.f32 %v218, %v349
    %v401 = vadd.f32 %v219, %v389
    %s402 = scalar_lea.vmem %s1, 16
    %v403 = vld [vmem:[%s402] sm:$0xf]
    %v404 = vld [vmem:[%s402 + $0x4] sm:$0xf]
    %v407 = vunpack.c.l.b16 %v403
    %v408 = vunpack.c.l.b16 %v404
    %v409 = vpack.c.b16 %v408, %v407
    %410 = vrot.lane.b32.xlu0 %v46, 126
    %v411 = vpop.permute.xlu0 %410
    %412 = vrot.lane.b32.xlu0 %v54, 126
    %v413 = vpop.permute.xlu0 %412
    %414 = vrot.lane.b32.xlu0 %v53, 126
    %v415 = vpop.permute.xlu0 %414
    %416 = vrot.lane.b32.xlu0 %v55, 126
    %v417 = vpop.permute.xlu0 %416
    %418 = vrot.lane.b32.xlu0 %v62, 126
    %v419 = vpop.permute.xlu0 %418
    %420 = vrot.lane.b32.xlu0 %v228, 126
    %v421 = vpop.permute.xlu0 %420
    %vm422 = vcmask 1031168
    %v423 = vsel %vm422, %v411, %v413
    %v424 = vsel %vm422, %v413, %v415
    %v425 = vsel %vm422, %v415, %v417
    %v426 = vsel %vm422, %v417, %v419
    %v427 = vsel %vm422, %v419, %v421
    %v429 = vsel %vm63, %v409, 0
    %v432 = vsel %vm67, %v423, 0
    %v435 = vsel %vm67, %v424, 0
    %v438 = vsel %vm67, %v425, 0
    %v441 = vsel %vm67, %v426, 0
    %v444 = vsel %vm67, %v427, 0
    %446 = vmatprep.subr.bf16.mxu0 0
    %447 = vmatpush1.bf16.msra.mxu0 0
    %448 = vmatprep.subr.bf16.mxu0 0
    %449 = vmatpush1.bf16.msra.mxu0 0
    %450 = vmatprep.subr.bf16.mxu0 0
    %451 = vmatpush1.bf16.msra.mxu0 0
    %452 = vmatprep.subr.bf16.mxu0 0
    %453 = vmatpush1.bf16.msra.mxu0 0
    %454 = vmatprep.subr.bf16.mxu0 0
    %455 = vmatpush1.bf16.msra.mxu0 0
    %456 = vmatprep.subr.bf16.mxu0 0
    %457 = vmatpush1.bf16.msra.mxu0 0
    %458 = vmatprep.subr.bf16.mxu0 0
    %459 = vmatpush1.bf16.msra.mxu0 0
    %460 = vmatprep.subr.bf16.mxu0 %v435
    %461 = vmatpush1.bf16.msra.mxu0 %v432
    %462 = vmatprep.subr.bf16.mxu0 0
    %463 = vmatpush2.bf16.msra.mxu0 0
    %464 = vmatprep.subr.bf16.mxu0 0
    %465 = vmatpush2.bf16.msra.mxu0 0
    %466 = vmatprep.subr.bf16.mxu0 0
    %467 = vmatpush2.bf16.msra.mxu0 0
    %468 = vmatprep.subr.bf16.mxu0 0
    %469 = vmatpush2.bf16.msra.mxu0 0
    %470 = vmatprep.subr.bf16.mxu0 0
    %471 = vmatpush2.bf16.msra.mxu0 0
    %472 = vmatprep.subr.bf16.mxu0 0
    %473 = vmatpush2.bf16.msra.mxu0 0
    %474 = vmatprep.subr.bf16.mxu0 0
    %475 = vmatpush2.bf16.msra.mxu0 0
    %476 = vmatprep.subr.bf16.mxu0 0
    %477 = vmatpush2.bf16.msra.mxu0 0
    %478 = vmatprep.mubr.bf16.mxu0 0
    %479 = vmatmul.mubr.bf16.gmra.mxu0 %v429
    %v480 = vpop.f32.mrf.mxu0
    %v481 = vadd.f32 0.0, %v480
    %v482 = vpop.f32.mrf.mxu0
    %v483 = vadd.f32 0.0, %v482
    %v484 = vpop.f32.mrf.mxu0
    %v485 = vadd.f32 0.0, %v484
    %v486 = vpop.f32.mrf.mxu0
    %v487 = vadd.f32 0.0, %v486
    %488 = vdwg.mxu0
    %489 = vmatprep.subr.bf16.mxu0 0
    %490 = vmatpush1.bf16.msra.mxu0 0
    %491 = vmatprep.subr.bf16.mxu0 0
    %492 = vmatpush1.bf16.msra.mxu0 0
    %493 = vmatprep.subr.bf16.mxu0 0
    %494 = vmatpush1.bf16.msra.mxu0 0
    %495 = vmatprep.subr.bf16.mxu0 0
    %496 = vmatpush1.bf16.msra.mxu0 0
    %497 = vmatprep.subr.bf16.mxu0 0
    %498 = vmatpush1.bf16.msra.mxu0 0
    %499 = vmatprep.subr.bf16.mxu0 0
    %500 = vmatpush1.bf16.msra.mxu0 0
    %501 = vmatprep.subr.bf16.mxu0 0
    %502 = vmatpush1.bf16.msra.mxu0 0
    %503 = vmatprep.subr.bf16.mxu0 %v441
    %504 = vmatpush1.bf16.msra.mxu0 %v438
    %505 = vmatprep.subr.bf16.mxu0 0
    %506 = vmatpush2.bf16.msra.mxu0 0
    %507 = vmatprep.subr.bf16.mxu0 0
    %508 = vmatpush2.bf16.msra.mxu0 0
    %509 = vmatprep.subr.bf16.mxu0 0
    %510 = vmatpush2.bf16.msra.mxu0 0
    %511 = vmatprep.subr.bf16.mxu0 0
    %512 = vmatpush2.bf16.msra.mxu0 0
    %513 = vmatprep.subr.bf16.mxu0 0
    %514 = vmatpush2.bf16.msra.mxu0 0
    %515 = vmatprep.subr.bf16.mxu0 0
    %516 = vmatpush2.bf16.msra.mxu0 0
    %517 = vmatprep.subr.bf16.mxu0 0
    %518 = vmatpush2.bf16.msra.mxu0 0
    %519 = vmatprep.subr.bf16.mxu0 0
    %520 = vmatpush2.bf16.msra.mxu0 0
    %521 = vmatprep.mubr.bf16.mxu0 0
    %522 = vmatmul.mubr.bf16.gmra.mxu0 %v429
    %v523 = vpop.f32.mrf.mxu0
    %v524 = vadd.f32 0.0, %v523
    %v525 = vpop.f32.mrf.mxu0
    %v526 = vadd.f32 0.0, %v525
    %v527 = vpop.f32.mrf.mxu0
    %v528 = vadd.f32 0.0, %v527
    %v529 = vpop.f32.mrf.mxu0
    %v530 = vadd.f32 0.0, %v529
    %531 = vdwg.mxu0
    %532 = vmatprep.subr.bf16.mxu0 0
    %533 = vmatpush1.bf16.msra.mxu0 0
    %534 = vmatprep.subr.bf16.mxu0 0
    %535 = vmatpush1.bf16.msra.mxu0 0
    %536 = vmatprep.subr.bf16.mxu0 0
    %537 = vmatpush1.bf16.msra.mxu0 0
    %538 = vmatprep.subr.bf16.mxu0 0
    %539 = vmatpush1.bf16.msra.mxu0 0
    %540 = vmatprep.subr.bf16.mxu0 0
    %541 = vmatpush1.bf16.msra.mxu0 0
    %542 = vmatprep.subr.bf16.mxu0 0
    %543 = vmatpush1.bf16.msra.mxu0 0
    %544 = vmatprep.subr.bf16.mxu0 0
    %545 = vmatpush1.bf16.msra.mxu0 0
    %546 = vmatprep.subr.bf16.mxu0 0
    %547 = vmatpush1.bf16.msra.mxu0 %v444
    %548 = vmatprep.subr.bf16.mxu0 0
    %549 = vmatpush2.bf16.msra.mxu0 0
    %550 = vmatprep.subr.bf16.mxu0 0
    %551 = vmatpush2.bf16.msra.mxu0 0
    %552 = vmatprep.subr.bf16.mxu0 0
    %553 = vmatpush2.bf16.msra.mxu0 0
    %554 = vmatprep.subr.bf16.mxu0 0
    %555 = vmatpush2.bf16.msra.mxu0 0
    %556 = vmatprep.subr.bf16.mxu0 0
    %557 = vmatpush2.bf16.msra.mxu0 0
    %558 = vmatprep.subr.bf16.mxu0 0
    %559 = vmatpush2.bf16.msra.mxu0 0
    %560 = vmatprep.subr.bf16.mxu0 0
    %561 = vmatpush2.bf16.msra.mxu0 0
    %562 = vmatprep.subr.bf16.mxu0 0
    %563 = vmatpush2.bf16.msra.mxu0 0
    %564 = vmatprep.mubr.bf16.mxu0 0
    %565 = vmatmul.mubr.bf16.gmra.mxu0 %v429
    %v566 = vpop.f32.mrf.mxu0
    %v567 = vadd.f32 0.0, %v566
    %v568 = vpop.f32.mrf.mxu0
    %v569 = vpop.f32.mrf.mxu0
    %v570 = vadd.f32 0.0, %v569
    %v571 = vpop.f32.mrf.mxu0
    %572 = vdwg.mxu0
    %v573 = vadd.f32 %v392, %v481
    %v574 = vadd.f32 %v393, %v483
    %v575 = vadd.f32 %v394, %v524
    %v576 = vadd.f32 %v395, %v526
    %v577 = vadd.f32 %v396, %v567
    %v578 = vadd.f32 %v397, %v485
    %v579 = vadd.f32 %v398, %v487
    %v580 = vadd.f32 %v399, %v528
    %v581 = vadd.f32 %v400, %v530
    %v582 = vadd.f32 %v401, %v570
    %s583 = scalar_lea.vmem %s1, 24
    %v584 = vld [vmem:[%s583] sm:$0xf]
    %v585 = vld [vmem:[%s583 + $0x4] sm:$0xf]
    %v588 = vunpack.c.l.b16 %v584
    %v589 = vunpack.c.l.b16 %v585
    %v590 = vpack.c.b16 %v589, %v588
    %591 = vrot.lane.b32.xlu0 %v46, 110
    %v592 = vpop.permute.xlu0 %591
    %593 = vrot.lane.b32.xlu0 %v54, 110
    %v594 = vpop.permute.xlu0 %593
    %595 = vrot.lane.b32.xlu0 %v53, 110
    %v596 = vpop.permute.xlu0 %595
    %597 = vrot.lane.b32.xlu0 %v55, 110
    %v598 = vpop.permute.xlu0 %597
    %599 = vrot.lane.b32.xlu0 %v62, 110
    %v600 = vpop.permute.xlu0 %599
    %601 = vrot.lane.b32.xlu0 %v228, 110
    %v602 = vpop.permute.xlu0 %601
    %vm603 = vcmask 900096
    %v604 = vsel %vm603, %v592, %v594
    %v605 = vsel %vm603, %v594, %v596
    %v606 = vsel %vm603, %v596, %v598
    %v607 = vsel %vm603, %v598, %v600
    %v608 = vsel %vm603, %v600, %v602
    %v610 = vsel %vm63, %v590, 0
    %v613 = vsel %vm67, %v604, 0
    %v616 = vsel %vm67, %v605, 0
    %v619 = vsel %vm67, %v606, 0
    %v622 = vsel %vm67, %v607, 0
    %v625 = vsel %vm67, %v608, 0
    %627 = vmatprep.subr.bf16.mxu0 0
    %628 = vmatpush1.bf16.msra.mxu0 0
    %629 = vmatprep.subr.bf16.mxu0 0
    %630 = vmatpush1.bf16.msra.mxu0 0
    %631 = vmatprep.subr.bf16.mxu0 0
    %632 = vmatpush1.bf16.msra.mxu0 0
    %633 = vmatprep.subr.bf16.mxu0 0
    %634 = vmatpush1.bf16.msra.mxu0 0
    %635 = vmatprep.subr.bf16.mxu0 0
    %636 = vmatpush1.bf16.msra.mxu0 0
    %637 = vmatprep.subr.bf16.mxu0 0
    %638 = vmatpush1.bf16.msra.mxu0 0
    %639 = vmatprep.subr.bf16.mxu0 0
    %640 = vmatpush1.bf16.msra.mxu0 0
    %641 = vmatprep.subr.bf16.mxu0 %v616
    %642 = vmatpush1.bf16.msra.mxu0 %v613
    %643 = vmatprep.subr.bf16.mxu0 0
    %644 = vmatpush2.bf16.msra.mxu0 0
    %645 = vmatprep.subr.bf16.mxu0 0
    %646 = vmatpush2.bf16.msra.mxu0 0
    %647 = vmatprep.subr.bf16.mxu0 0
    %648 = vmatpush2.bf16.msra.mxu0 0
    %649 = vmatprep.subr.bf16.mxu0 0
    %650 = vmatpush2.bf16.msra.mxu0 0
    %651 = vmatprep.subr.bf16.mxu0 0
    %652 = vmatpush2.bf16.msra.mxu0 0
    %653 = vmatprep.subr.bf16.mxu0 0
    %654 = vmatpush2.bf16.msra.mxu0 0
    %655 = vmatprep.subr.bf16.mxu0 0
    %656 = vmatpush2.bf16.msra.mxu0 0
    %657 = vmatprep.subr.bf16.mxu0 0
    %658 = vmatpush2.bf16.msra.mxu0 0
    %659 = vmatprep.mubr.bf16.mxu0 0
    %660 = vmatmul.mubr.bf16.gmra.mxu0 %v610
    %v661 = vpop.f32.mrf.mxu0
    %v662 = vadd.f32 0.0, %v661
    %v663 = vpop.f32.mrf.mxu0
    %v664 = vadd.f32 0.0, %v663
    %v665 = vpop.f32.mrf.mxu0
    %v666 = vadd.f32 0.0, %v665
    %v667 = vpop.f32.mrf.mxu0
    %v668 = vadd.f32 0.0, %v667
    %669 = vdwg.mxu0
    %670 = vmatprep.subr.bf16.mxu0 0
    %671 = vmatpush1.bf16.msra.mxu0 0
    %672 = vmatprep.subr.bf16.mxu0 0
    %673 = vmatpush1.bf16.msra.mxu0 0
    %674 = vmatprep.subr.bf16.mxu0 0
    %675 = vmatpush1.bf16.msra.mxu0 0
    %676 = vmatprep.subr.bf16.mxu0 0
    %677 = vmatpush1.bf16.msra.mxu0 0
    %678 = vmatprep.subr.bf16.mxu0 0
    %679 = vmatpush1.bf16.msra.mxu0 0
    %680 = vmatprep.subr.bf16.mxu0 0
    %681 = vmatpush1.bf16.msra.mxu0 0
    %682 = vmatprep.subr.bf16.mxu0 0
    %683 = vmatpush1.bf16.msra.mxu0 0
    %684 = vmatprep.subr.bf16.mxu0 %v622
    %685 = vmatpush1.bf16.msra.mxu0 %v619
    %686 = vmatprep.subr.bf16.mxu0 0
    %687 = vmatpush2.bf16.msra.mxu0 0
    %688 = vmatprep.subr.bf16.mxu0 0
    %689 = vmatpush2.bf16.msra.mxu0 0
    %690 = vmatprep.subr.bf16.mxu0 0
    %691 = vmatpush2.bf16.msra.mxu0 0
    %692 = vmatprep.subr.bf16.mxu0 0
    %693 = vmatpush2.bf16.msra.mxu0 0
    %694 = vmatprep.subr.bf16.mxu0 0
    %695 = vmatpush2.bf16.msra.mxu0 0
    %696 = vmatprep.subr.bf16.mxu0 0
    %697 = vmatpush2.bf16.msra.mxu0 0
    %698 = vmatprep.subr.bf16.mxu0 0
    %699 = vmatpush2.bf16.msra.mxu0 0
    %700 = vmatprep.subr.bf16.mxu0 0
    %701 = vmatpush2.bf16.msra.mxu0 0
    %702 = vmatprep.mubr.bf16.mxu0 0
    %703 = vmatmul.mubr.bf16.gmra.mxu0 %v610
    %v704 = vpop.f32.mrf.mxu0
    %v705 = vadd.f32 0.0, %v704
    %v706 = vpop.f32.mrf.mxu0
    %v707 = vadd.f32 0.0, %v706
    %v708 = vpop.f32.mrf.mxu0
    %v709 = vadd.f32 0.0, %v708
    %v710 = vpop.f32.mrf.mxu0
    %v711 = vadd.f32 0.0, %v710
    %712 = vdwg.mxu0
    %713 = vmatprep.subr.bf16.mxu0 0
    %714 = vmatpush1.bf16.msra.mxu0 0
    %715 = vmatprep.subr.bf16.mxu0 0
    %716 = vmatpush1.bf16.msra.mxu0 0
    %717 = vmatprep.subr.bf16.mxu0 0
    %718 = vmatpush1.bf16.msra.mxu0 0
    %719 = vmatprep.subr.bf16.mxu0 0
    %720 = vmatpush1.bf16.msra.mxu0 0
    %721 = vmatprep.subr.bf16.mxu0 0
    %722 = vmatpush1.bf16.msra.mxu0 0
    %723 = vmatprep.subr.bf16.mxu0 0
    %724 = vmatpush1.bf16.msra.mxu0 0
    %725 = vmatprep.subr.bf16.mxu0 0
    %726 = vmatpush1.bf16.msra.mxu0 0
    %727 = vmatprep.subr.bf16.mxu0 0
    %728 = vmatpush1.bf16.msra.mxu0 %v625
    %729 = vmatprep.subr.bf16.mxu0 0
    %730 = vmatpush2.bf16.msra.mxu0 0
    %731 = vmatprep.subr.bf16.mxu0 0
    %732 = vmatpush2.bf16.msra.mxu0 0
    %733 = vmatprep.subr.bf16.mxu0 0
    %734 = vmatpush2.bf16.msra.mxu0 0
    %735 = vmatprep.subr.bf16.mxu0 0
    %736 = vmatpush2.bf16.msra.mxu0 0
    %737 = vmatprep.subr.bf16.mxu0 0
    %738 = vmatpush2.bf16.msra.mxu0 0
    %739 = vmatprep.subr.bf16.mxu0 0
    %740 = vmatpush2.bf16.msra.mxu0 0
    %741 = vmatprep.subr.bf16.mxu0 0
    %742 = vmatpush2.bf16.msra.mxu0 0
    %743 = vmatprep.subr.bf16.mxu0 0
    %744 = vmatpush2.bf16.msra.mxu0 0
    %745 = vmatprep.mubr.bf16.mxu0 0
    %746 = vmatmul.mubr.bf16.gmra.mxu0 %v610
    %v747 = vpop.f32.mrf.mxu0
    %v748 = vadd.f32 0.0, %v747
    %v749 = vpop.f32.mrf.mxu0
    %v750 = vpop.f32.mrf.mxu0
    %v751 = vadd.f32 0.0, %v750
    %v752 = vpop.f32.mrf.mxu0
    %753 = vdwg.mxu0
    %v754 = vadd.f32 %v573, %v662
    %v755 = vadd.f32 %v574, %v664
    %v756 = vadd.f32 %v575, %v705
    %v757 = vadd.f32 %v576, %v707
    %v758 = vadd.f32 %v577, %v748
    %v759 = vadd.f32 %v578, %v666
    %v760 = vadd.f32 %v579, %v668
    %v761 = vadd.f32 %v580, %v709
    %v762 = vadd.f32 %v581, %v711
    %v763 = vadd.f32 %v582, %v751
    %s764 = scalar_lea.vmem %s1, 32
    %v765 = vld [vmem:[%s764] sm:$0xf]
    %v766 = vld [vmem:[%s764 + $0x4] sm:$0xf]
    %v769 = vunpack.c.l.b16 %v765
    %v770 = vunpack.c.l.b16 %v766
    %v771 = vpack.c.b16 %v770, %v769
    %772 = vrot.lane.b32.xlu0 %v46, 109
    %v773 = vpop.permute.xlu0 %772
    %774 = vrot.lane.b32.xlu0 %v54, 109
    %v775 = vpop.permute.xlu0 %774
    %776 = vrot.lane.b32.xlu0 %v53, 109
    %v777 = vpop.permute.xlu0 %776
    %778 = vrot.lane.b32.xlu0 %v55, 109
    %v779 = vpop.permute.xlu0 %778
    %780 = vrot.lane.b32.xlu0 %v62, 109
    %v781 = vpop.permute.xlu0 %780
    %782 = vrot.lane.b32.xlu0 %v228, 109
    %v783 = vpop.permute.xlu0 %782
    %vm784 = vcmask 891904
    %v785 = vsel %vm784, %v773, %v775
    %v786 = vsel %vm784, %v775, %v777
    %v787 = vsel %vm784, %v777, %v779
    %v788 = vsel %vm784, %v779, %v781
    %v789 = vsel %vm784, %v781, %v783
    %v791 = vsel %vm63, %v771, 0
    %v794 = vsel %vm67, %v785, 0
    %v797 = vsel %vm67, %v786, 0
    %v800 = vsel %vm67, %v787, 0
    %v803 = vsel %vm67, %v788, 0
    %v806 = vsel %vm67, %v789, 0
    %808 = vmatprep.subr.bf16.mxu0 0
    %809 = vmatpush1.bf16.msra.mxu0 0
    %810 = vmatprep.subr.bf16.mxu0 0
    %811 = vmatpush1.bf16.msra.mxu0 0
    %812 = vmatprep.subr.bf16.mxu0 0
    %813 = vmatpush1.bf16.msra.mxu0 0
    %814 = vmatprep.subr.bf16.mxu0 0
    %815 = vmatpush1.bf16.msra.mxu0 0
    %816 = vmatprep.subr.bf16.mxu0 0
    %817 = vmatpush1.bf16.msra.mxu0 0
    %818 = vmatprep.subr.bf16.mxu0 0
    %819 = vmatpush1.bf16.msra.mxu0 0
    %820 = vmatprep.subr.bf16.mxu0 0
    %821 = vmatpush1.bf16.msra.mxu0 0
    %822 = vmatprep.subr.bf16.mxu0 %v797
    %823 = vmatpush1.bf16.msra.mxu0 %v794
    %824 = vmatprep.subr.bf16.mxu0 0
    %825 = vmatpush2.bf16.msra.mxu0 0
    %826 = vmatprep.subr.bf16.mxu0 0
    %827 = vmatpush2.bf16.msra.mxu0 0
    %828 = vmatprep.subr.bf16.mxu0 0
    %829 = vmatpush2.bf16.msra.mxu0 0
    %830 = vmatprep.subr.bf16.mxu0 0
    %831 = vmatpush2.bf16.msra.mxu0 0
    %832 = vmatprep.subr.bf16.mxu0 0
    %833 = vmatpush2.bf16.msra.mxu0 0
    %834 = vmatprep.subr.bf16.mxu0 0
    %835 = vmatpush2.bf16.msra.mxu0 0
    %836 = vmatprep.subr.bf16.mxu0 0
    %837 = vmatpush2.bf16.msra.mxu0 0
    %838 = vmatprep.subr.bf16.mxu0 0
    %839 = vmatpush2.bf16.msra.mxu0 0
    %840 = vmatprep.mubr.bf16.mxu0 0
    %841 = vmatmul.mubr.bf16.gmra.mxu0 %v791
    %v842 = vpop.f32.mrf.mxu0
    %v843 = vadd.f32 0.0, %v842
    %v844 = vpop.f32.mrf.mxu0
    %v845 = vadd.f32 0.0, %v844
    %v846 = vpop.f32.mrf.mxu0
    %v847 = vadd.f32 0.0, %v846
    %v848 = vpop.f32.mrf.mxu0
    %v849 = vadd.f32 0.0, %v848
    %850 = vdwg.mxu0
    %851 = vmatprep.subr.bf16.mxu0 0
    %852 = vmatpush1.bf16.msra.mxu0 0
    %853 = vmatprep.subr.bf16.mxu0 0
    %854 = vmatpush1.bf16.msra.mxu0 0
    %855 = vmatprep.subr.bf16.mxu0 0
    %856 = vmatpush1.bf16.msra.mxu0 0
    %857 = vmatprep.subr.bf16.mxu0 0
    %858 = vmatpush1.bf16.msra.mxu0 0
    %859 = vmatprep.subr.bf16.mxu0 0
    %860 = vmatpush1.bf16.msra.mxu0 0
    %861 = vmatprep.subr.bf16.mxu0 0
    %862 = vmatpush1.bf16.msra.mxu0 0
    %863 = vmatprep.subr.bf16.mxu0 0
    %864 = vmatpush1.bf16.msra.mxu0 0
    %865 = vmatprep.subr.bf16.mxu0 %v803
    %866 = vmatpush1.bf16.msra.mxu0 %v800
    %867 = vmatprep.subr.bf16.mxu0 0
    %868 = vmatpush2.bf16.msra.mxu0 0
    %869 = vmatprep.subr.bf16.mxu0 0
    %870 = vmatpush2.bf16.msra.mxu0 0
    %871 = vmatprep.subr.bf16.mxu0 0
    %872 = vmatpush2.bf16.msra.mxu0 0
    %873 = vmatprep.subr.bf16.mxu0 0
    %874 = vmatpush2.bf16.msra.mxu0 0
    %875 = vmatprep.subr.bf16.mxu0 0
    %876 = vmatpush2.bf16.msra.mxu0 0
    %877 = vmatprep.subr.bf16.mxu0 0
    %878 = vmatpush2.bf16.msra.mxu0 0
    %879 = vmatprep.subr.bf16.mxu0 0
    %880 = vmatpush2.bf16.msra.mxu0 0
    %881 = vmatprep.subr.bf16.mxu0 0
    %882 = vmatpush2.bf16.msra.mxu0 0
    %883 = vmatprep.mubr.bf16.mxu0 0
    %884 = vmatmul.mubr.bf16.gmra.mxu0 %v791
    %v885 = vpop.f32.mrf.mxu0
    %v886 = vadd.f32 0.0, %v885
    %v887 = vpop.f32.mrf.mxu0
    %v888 = vadd.f32 0.0, %v887
    %v889 = vpop.f32.mrf.mxu0
    %v890 = vadd.f32 0.0, %v889
    %v891 = vpop.f32.mrf.mxu0
    %v892 = vadd.f32 0.0, %v891
    %893 = vdwg.mxu0
    %894 = vmatprep.subr.bf16.mxu0 0
    %895 = vmatpush1.bf16.msra.mxu0 0
    %896 = vmatprep.subr.bf16.mxu0 0
    %897 = vmatpush1.bf16.msra.mxu0 0
    %898 = vmatprep.subr.bf16.mxu0 0
    %899 = vmatpush1.bf16.msra.mxu0 0
    %900 = vmatprep.subr.bf16.mxu0 0
    %901 = vmatpush1.bf16.msra.mxu0 0
    %902 = vmatprep.subr.bf16.mxu0 0
    %903 = vmatpush1.bf16.msra.mxu0 0
    %904 = vmatprep.subr.bf16.mxu0 0
    %905 = vmatpush1.bf16.msra.mxu0 0
    %906 = vmatprep.subr.bf16.mxu0 0
    %907 = vmatpush1.bf16.msra.mxu0 0
    %908 = vmatprep.subr.bf16.mxu0 0
    %909 = vmatpush1.bf16.msra.mxu0 %v806
    %910 = vmatprep.subr.bf16.mxu0 0
    %911 = vmatpush2.bf16.msra.mxu0 0
    %912 = vmatprep.subr.bf16.mxu0 0
    %913 = vmatpush2.bf16.msra.mxu0 0
    %914 = vmatprep.subr.bf16.mxu0 0
    %915 = vmatpush2.bf16.msra.mxu0 0
    %916 = vmatprep.subr.bf16.mxu0 0
    %917 = vmatpush2.bf16.msra.mxu0 0
    %918 = vmatprep.subr.bf16.mxu0 0
    %919 = vmatpush2.bf16.msra.mxu0 0
    %920 = vmatprep.subr.bf16.mxu0 0
    %921 = vmatpush2.bf16.msra.mxu0 0
    %922 = vmatprep.subr.bf16.mxu0 0
    %923 = vmatpush2.bf16.msra.mxu0 0
    %924 = vmatprep.subr.bf16.mxu0 0
    %925 = vmatpush2.bf16.msra.mxu0 0
    %926 = vmatprep.mubr.bf16.mxu0 0
    %927 = vmatmul.mubr.bf16.gmra.mxu0 %v791
    %v928 = vpop.f32.mrf.mxu0
    %v929 = vadd.f32 0.0, %v928
    %v930 = vpop.f32.mrf.mxu0
    %v931 = vpop.f32.mrf.mxu0
    %v932 = vadd.f32 0.0, %v931
    %v933 = vpop.f32.mrf.mxu0
    %934 = vdwg.mxu0
    %v935 = vadd.f32 %v754, %v843
    %v936 = vadd.f32 %v755, %v845
    %v937 = vadd.f32 %v756, %v886
    %v938 = vadd.f32 %v757, %v888
    %v939 = vadd.f32 %v758, %v929
    %v940 = vadd.f32 %v759, %v847
    %v941 = vadd.f32 %v760, %v849
    %v942 = vadd.f32 %v761, %v890
    %v943 = vadd.f32 %v762, %v892
    %v944 = vadd.f32 %v763, %v932
    %s945 = scalar_lea.vmem %s1, 40
    %v946 = vld [vmem:[%s945] sm:$0xf]
    %v947 = vld [vmem:[%s945 + $0x4] sm:$0xf]
    %v950 = vunpack.c.l.b16 %v946
    %v951 = vunpack.c.l.b16 %v947
    %v952 = vpack.c.b16 %v951, %v950
    %953 = vrot.lane.b32.xlu0 %v46, 108
    %v954 = vpop.permute.xlu0 %953
    %955 = vrot.lane.b32.xlu0 %v54, 108
    %v956 = vpop.permute.xlu0 %955
    %957 = vrot.lane.b32.xlu0 %v53, 108
    %v958 = vpop.permute.xlu0 %957
    %959 = vrot.lane.b32.xlu0 %v55, 108
    %v960 = vpop.permute.xlu0 %959
    %961 = vrot.lane.b32.xlu0 %v62, 108
    %v962 = vpop.permute.xlu0 %961
    %963 = vrot.lane.b32.xlu0 %v228, 108
    %v964 = vpop.permute.xlu0 %963
    %vm965 = vcmask 883712
    %v966 = vsel %vm965, %v954, %v956
    %v967 = vsel %vm965, %v956, %v958
    %v968 = vsel %vm965, %v958, %v960
    %v969 = vsel %vm965, %v960, %v962
    %v970 = vsel %vm965, %v962, %v964
    %v972 = vsel %vm63, %v952, 0
    %v975 = vsel %vm67, %v966, 0
    %v978 = vsel %vm67, %v967, 0
    %v981 = vsel %vm67, %v968, 0
    %v984 = vsel %vm67, %v969, 0
    %v987 = vsel %vm67, %v970, 0
    %989 = vmatprep.subr.bf16.mxu0 0
    %990 = vmatpush1.bf16.msra.mxu0 0
    %991 = vmatprep.subr.bf16.mxu0 0
    %992 = vmatpush1.bf16.msra.mxu0 0
    %993 = vmatprep.subr.bf16.mxu0 0
    %994 = vmatpush1.bf16.msra.mxu0 0
    %995 = vmatprep.subr.bf16.mxu0 0
    %996 = vmatpush1.bf16.msra.mxu0 0
    %997 = vmatprep.subr.bf16.mxu0 0
    %998 = vmatpush1.bf16.msra.mxu0 0
    %999 = vmatprep.subr.bf16.mxu0 0
    %1000 = vmatpush1.bf16.msra.mxu0 0
    %1001 = vmatprep.subr.bf16.mxu0 0
    %1002 = vmatpush1.bf16.msra.mxu0 0
    %1003 = vmatprep.subr.bf16.mxu0 %v978
    %1004 = vmatpush1.bf16.msra.mxu0 %v975
    %1005 = vmatprep.subr.bf16.mxu0 0
    %1006 = vmatpush2.bf16.msra.mxu0 0
    %1007 = vmatprep.subr.bf16.mxu0 0
    %1008 = vmatpush2.bf16.msra.mxu0 0
    %1009 = vmatprep.subr.bf16.mxu0 0
    %1010 = vmatpush2.bf16.msra.mxu0 0
    %1011 = vmatprep.subr.bf16.mxu0 0
    %1012 = vmatpush2.bf16.msra.mxu0 0
    %1013 = vmatprep.subr.bf16.mxu0 0
    %1014 = vmatpush2.bf16.msra.mxu0 0
    %1015 = vmatprep.subr.bf16.mxu0 0
    %1016 = vmatpush2.bf16.msra.mxu0 0
    %1017 = vmatprep.subr.bf16.mxu0 0
    %1018 = vmatpush2.bf16.msra.mxu0 0
    %1019 = vmatprep.subr.bf16.mxu0 0
    %1020 = vmatpush2.bf16.msra.mxu0 0
    %1021 = vmatprep.mubr.bf16.mxu0 0
    %1022 = vmatmul.mubr.bf16.gmra.mxu0 %v972
    %v1023 = vpop.f32.mrf.mxu0
    %v1024 = vadd.f32 0.0, %v1023
    %v1025 = vpop.f32.mrf.mxu0
    %v1026 = vadd.f32 0.0, %v1025
    %v1027 = vpop.f32.mrf.mxu0
    %v1028 = vadd.f32 0.0, %v1027
    %v1029 = vpop.f32.mrf.mxu0
    %v1030 = vadd.f32 0.0, %v1029
    %1031 = vdwg.mxu0
    %1032 = vmatprep.subr.bf16.mxu0 0
    %1033 = vmatpush1.bf16.msra.mxu0 0
    %1034 = vmatprep.subr.bf16.mxu0 0
    %1035 = vmatpush1.bf16.msra.mxu0 0
    %1036 = vmatprep.subr.bf16.mxu0 0
    %1037 = vmatpush1.bf16.msra.mxu0 0
    %1038 = vmatprep.subr.bf16.mxu0 0
    %1039 = vmatpush1.bf16.msra.mxu0 0
    %1040 = vmatprep.subr.bf16.mxu0 0
    %1041 = vmatpush1.bf16.msra.mxu0 0
    %1042 = vmatprep.subr.bf16.mxu0 0
    %1043 = vmatpush1.bf16.msra.mxu0 0
    %1044 = vmatprep.subr.bf16.mxu0 0
    %1045 = vmatpush1.bf16.msra.mxu0 0
    %1046 = vmatprep.subr.bf16.mxu0 %v984
    %1047 = vmatpush1.bf16.msra.mxu0 %v981
    %1048 = vmatprep.subr.bf16.mxu0 0
    %1049 = vmatpush2.bf16.msra.mxu0 0
    %1050 = vmatprep.subr.bf16.mxu0 0
    %1051 = vmatpush2.bf16.msra.mxu0 0
    %1052 = vmatprep.subr.bf16.mxu0 0
    %1053 = vmatpush2.bf16.msra.mxu0 0
    %1054 = vmatprep.subr.bf16.mxu0 0
    %1055 = vmatpush2.bf16.msra.mxu0 0
    %1056 = vmatprep.subr.bf16.mxu0 0
    %1057 = vmatpush2.bf16.msra.mxu0 0
    %1058 = vmatprep.subr.bf16.mxu0 0
    %1059 = vmatpush2.bf16.msra.mxu0 0
    %1060 = vmatprep.subr.bf16.mxu0 0
    %1061 = vmatpush2.bf16.msra.mxu0 0
    %1062 = vmatprep.subr.bf16.mxu0 0
    %1063 = vmatpush2.bf16.msra.mxu0 0
    %1064 = vmatprep.mubr.bf16.mxu0 0
    %1065 = vmatmul.mubr.bf16.gmra.mxu0 %v972
    %v1066 = vpop.f32.mrf.mxu0
    %v1067 = vadd.f32 0.0, %v1066
    %v1068 = vpop.f32.mrf.mxu0
    %v1069 = vadd.f32 0.0, %v1068
    %v1070 = vpop.f32.mrf.mxu0
    %v1071 = vadd.f32 0.0, %v1070
    %v1072 = vpop.f32.mrf.mxu0
    %v1073 = vadd.f32 0.0, %v1072
    %1074 = vdwg.mxu0
    %1075 = vmatprep.subr.bf16.mxu0 0
    %1076 = vmatpush1.bf16.msra.mxu0 0
    %1077 = vmatprep.subr.bf16.mxu0 0
    %1078 = vmatpush1.bf16.msra.mxu0 0
    %1079 = vmatprep.subr.bf16.mxu0 0
    %1080 = vmatpush1.bf16.msra.mxu0 0
    %1081 = vmatprep.subr.bf16.mxu0 0
    %1082 = vmatpush1.bf16.msra.mxu0 0
    %1083 = vmatprep.subr.bf16.mxu0 0
    %1084 = vmatpush1.bf16.msra.mxu0 0
    %1085 = vmatprep.subr.bf16.mxu0 0
    %1086 = vmatpush1.bf16.msra.mxu0 0
    %1087 = vmatprep.subr.bf16.mxu0 0
    %1088 = vmatpush1.bf16.msra.mxu0 0
    %1089 = vmatprep.subr.bf16.mxu0 0
    %1090 = vmatpush1.bf16.msra.mxu0 %v987
    %1091 = vmatprep.subr.bf16.mxu0 0
    %1092 = vmatpush2.bf16.msra.mxu0 0
    %1093 = vmatprep.subr.bf16.mxu0 0
    %1094 = vmatpush2.bf16.msra.mxu0 0
    %1095 = vmatprep.subr.bf16.mxu0 0
    %1096 = vmatpush2.bf16.msra.mxu0 0
    %1097 = vmatprep.subr.bf16.mxu0 0
    %1098 = vmatpush2.bf16.msra.mxu0 0
    %1099 = vmatprep.subr.bf16.mxu0 0
    %1100 = vmatpush2.bf16.msra.mxu0 0
    %1101 = vmatprep.subr.bf16.mxu0 0
    %1102 = vmatpush2.bf16.msra.mxu0 0
    %1103 = vmatprep.subr.bf16.mxu0 0
    %1104 = vmatpush2.bf16.msra.mxu0 0
    %1105 = vmatprep.subr.bf16.mxu0 0
    %1106 = vmatpush2.bf16.msra.mxu0 0
    %1107 = vmatprep.mubr.bf16.mxu0 0
    %1108 = vmatmul.mubr.bf16.gmra.mxu0 %v972
    %v1109 = vpop.f32.mrf.mxu0
    %v1110 = vadd.f32 0.0, %v1109
    %v1111 = vpop.f32.mrf.mxu0
    %v1112 = vpop.f32.mrf.mxu0
    %v1113 = vadd.f32 0.0, %v1112
    %v1114 = vpop.f32.mrf.mxu0
    %1115 = vdwg.mxu0
    %v1116 = vadd.f32 %v935, %v1024
    %v1117 = vadd.f32 %v936, %v1026
    %v1118 = vadd.f32 %v937, %v1067
    %v1119 = vadd.f32 %v938, %v1069
    %v1120 = vadd.f32 %v939, %v1110
    %v1121 = vadd.f32 %v940, %v1028
    %v1122 = vadd.f32 %v941, %v1030
    %v1123 = vadd.f32 %v942, %v1071
    %v1124 = vadd.f32 %v943, %v1073
    %v1125 = vadd.f32 %v944, %v1113
    %s1126 = scalar_lea.vmem %s1, 48
    %v1127 = vld [vmem:[%s1126] sm:$0xf]
    %v1128 = vld [vmem:[%s1126 + $0x4] sm:$0xf]
    %v1131 = vunpack.c.l.b16 %v1127
    %v1132 = vunpack.c.l.b16 %v1128
    %v1133 = vpack.c.b16 %v1132, %v1131
    %1134 = vrot.lane.b32.xlu0 %v46, 92
    %v1135 = vpop.permute.xlu0 %1134
    %1136 = vrot.lane.b32.xlu0 %v54, 92
    %v1137 = vpop.permute.xlu0 %1136
    %1138 = vrot.lane.b32.xlu0 %v53, 92
    %v1139 = vpop.permute.xlu0 %1138
    %1140 = vrot.lane.b32.xlu0 %v55, 92
    %v1141 = vpop.permute.xlu0 %1140
    %1142 = vrot.lane.b32.xlu0 %v62, 92
    %v1143 = vpop.permute.xlu0 %1142
    %1144 = vrot.lane.b32.xlu0 %v228, 92
    %v1145 = vpop.permute.xlu0 %1144
    %vm1146 = vcmask 752640
    %v1147 = vsel %vm1146, %v1135, %v1137
    %v1148 = vsel %vm1146, %v1137, %v1139
    %v1149 = vsel %vm1146, %v1139, %v1141
    %v1150 = vsel %vm1146, %v1141, %v1143
    %v1151 = vsel %vm1146, %v1143, %v1145
    %v1153 = vsel %vm63, %v1133, 0
    %v1156 = vsel %vm67, %v1147, 0
    %v1159 = vsel %vm67, %v1148, 0
    %v1162 = vsel %vm67, %v1149, 0
    %v1165 = vsel %vm67, %v1150, 0
    %v1168 = vsel %vm67, %v1151, 0
    %1170 = vmatprep.subr.bf16.mxu0 0
    %1171 = vmatpush1.bf16.msra.mxu0 0
    %1172 = vmatprep.subr.bf16.mxu0 0
    %1173 = vmatpush1.bf16.msra.mxu0 0
    %1174 = vmatprep.subr.bf16.mxu0 0
    %1175 = vmatpush1.bf16.msra.mxu0 0
    %1176 = vmatprep.subr.bf16.mxu0 0
    %1177 = vmatpush1.bf16.msra.mxu0 0
    %1178 = vmatprep.subr.bf16.mxu0 0
    %1179 = vmatpush1.bf16.msra.mxu0 0
    %1180 = vmatprep.subr.bf16.mxu0 0
    %1181 = vmatpush1.bf16.msra.mxu0 0
    %1182 = vmatprep.subr.bf16.mxu0 0
    %1183 = vmatpush1.bf16.msra.mxu0 0
    %1184 = vmatprep.subr.bf16.mxu0 %v1159
    %1185 = vmatpush1.bf16.msra.mxu0 %v1156
    %1186 = vmatprep.subr.bf16.mxu0 0
    %1187 = vmatpush2.bf16.msra.mxu0 0
    %1188 = vmatprep.subr.bf16.mxu0 0
    %1189 = vmatpush2.bf16.msra.mxu0 0
    %1190 = vmatprep.subr.bf16.mxu0 0
    %1191 = vmatpush2.bf16.msra.mxu0 0
    %1192 = vmatprep.subr.bf16.mxu0 0
    %1193 = vmatpush2.bf16.msra.mxu0 0
    %1194 = vmatprep.subr.bf16.mxu0 0
    %1195 = vmatpush2.bf16.msra.mxu0 0
    %1196 = vmatprep.subr.bf16.mxu0 0
    %1197 = vmatpush2.bf16.msra.mxu0 0
    %1198 = vmatprep.subr.bf16.mxu0 0
    %1199 = vmatpush2.bf16.msra.mxu0 0
    %1200 = vmatprep.subr.bf16.mxu0 0
    %1201 = vmatpush2.bf16.msra.mxu0 0
    %1202 = vmatprep.mubr.bf16.mxu0 0
    %1203 = vmatmul.mubr.bf16.gmra.mxu0 %v1153
    %v1204 = vpop.f32.mrf.mxu0
    %v1205 = vadd.f32 0.0, %v1204
    %v1206 = vpop.f32.mrf.mxu0
    %v1207 = vadd.f32 0.0, %v1206
    %v1208 = vpop.f32.mrf.mxu0
    %v1209 = vadd.f32 0.0, %v1208
    %v1210 = vpop.f32.mrf.mxu0
    %v1211 = vadd.f32 0.0, %v1210
    %1212 = vdwg.mxu0
    %1213 = vmatprep.subr.bf16.mxu0 0
    %1214 = vmatpush1.bf16.msra.mxu0 0
    %1215 = vmatprep.subr.bf16.mxu0 0
    %1216 = vmatpush1.bf16.msra.mxu0 0
    %1217 = vmatprep.subr.bf16.mxu0 0
    %1218 = vmatpush1.bf16.msra.mxu0 0
    %1219 = vmatprep.subr.bf16.mxu0 0
    %1220 = vmatpush1.bf16.msra.mxu0 0
    %1221 = vmatprep.subr.bf16.mxu0 0
    %1222 = vmatpush1.bf16.msra.mxu0 0
    %1223 = vmatprep.subr.bf16.mxu0 0
    %1224 = vmatpush1.bf16.msra.mxu0 0
    %1225 = vmatprep.subr.bf16.mxu0 0
    %1226 = vmatpush1.bf16.msra.mxu0 0
    %1227 = vmatprep.subr.bf16.mxu0 %v1165
    %1228 = vmatpush1.bf16.msra.mxu0 %v1162
    %1229 = vmatprep.subr.bf16.mxu0 0
    %1230 = vmatpush2.bf16.msra.mxu0 0
    %1231 = vmatprep.subr.bf16.mxu0 0
    %1232 = vmatpush2.bf16.msra.mxu0 0
    %1233 = vmatprep.subr.bf16.mxu0 0
    %1234 = vmatpush2.bf16.msra.mxu0 0
    %1235 = vmatprep.subr.bf16.mxu0 0
    %1236 = vmatpush2.bf16.msra.mxu0 0
    %1237 = vmatprep.subr.bf16.mxu0 0
    %1238 = vmatpush2.bf16.msra.mxu0 0
    %1239 = vmatprep.subr.bf16.mxu0 0
    %1240 = vmatpush2.bf16.msra.mxu0 0
    %1241 = vmatprep.subr.bf16.mxu0 0
    %1242 = vmatpush2.bf16.msra.mxu0 0
    %1243 = vmatprep.subr.bf16.mxu0 0
    %1244 = vmatpush2.bf16.msra.mxu0 0
    %1245 = vmatprep.mubr.bf16.mxu0 0
    %1246 = vmatmul.mubr.bf16.gmra.mxu0 %v1153
    %v1247 = vpop.f32.mrf.mxu0
    %v1248 = vadd.f32 0.0, %v1247
    %v1249 = vpop.f32.mrf.mxu0
    %v1250 = vadd.f32 0.0, %v1249
    %v1251 = vpop.f32.mrf.mxu0
    %v1252 = vadd.f32 0.0, %v1251
    %v1253 = vpop.f32.mrf.mxu0
    %v1254 = vadd.f32 0.0, %v1253
    %1255 = vdwg.mxu0
    %1256 = vmatprep.subr.bf16.mxu0 0
    %1257 = vmatpush1.bf16.msra.mxu0 0
    %1258 = vmatprep.subr.bf16.mxu0 0
    %1259 = vmatpush1.bf16.msra.mxu0 0
    %1260 = vmatprep.subr.bf16.mxu0 0
    %1261 = vmatpush1.bf16.msra.mxu0 0
    %1262 = vmatprep.subr.bf16.mxu0 0
    %1263 = vmatpush1.bf16.msra.mxu0 0
    %1264 = vmatprep.subr.bf16.mxu0 0
    %1265 = vmatpush1.bf16.msra.mxu0 0
    %1266 = vmatprep.subr.bf16.mxu0 0
    %1267 = vmatpush1.bf16.msra.mxu0 0
    %1268 = vmatprep.subr.bf16.mxu0 0
    %1269 = vmatpush1.bf16.msra.mxu0 0
    %1270 = vmatprep.subr.bf16.mxu0 0
    %1271 = vmatpush1.bf16.msra.mxu0 %v1168
    %1272 = vmatprep.subr.bf16.mxu0 0
    %1273 = vmatpush2.bf16.msra.mxu0 0
    %1274 = vmatprep.subr.bf16.mxu0 0
    %1275 = vmatpush2.bf16.msra.mxu0 0
    %1276 = vmatprep.subr.bf16.mxu0 0
    %1277 = vmatpush2.bf16.msra.mxu0 0
    %1278 = vmatprep.subr.bf16.mxu0 0
    %1279 = vmatpush2.bf16.msra.mxu0 0
    %1280 = vmatprep.subr.bf16.mxu0 0
    %1281 = vmatpush2.bf16.msra.mxu0 0
    %1282 = vmatprep.subr.bf16.mxu0 0
    %1283 = vmatpush2.bf16.msra.mxu0 0
    %1284 = vmatprep.subr.bf16.mxu0 0
    %1285 = vmatpush2.bf16.msra.mxu0 0
    %1286 = vmatprep.subr.bf16.mxu0 0
    %1287 = vmatpush2.bf16.msra.mxu0 0
    %1288 = vmatprep.mubr.bf16.mxu0 0
    %1289 = vmatmul.mubr.bf16.gmra.mxu0 %v1153
    %v1290 = vpop.f32.mrf.mxu0
    %v1291 = vadd.f32 0.0, %v1290
    %v1292 = vpop.f32.mrf.mxu0
    %v1293 = vpop.f32.mrf.mxu0
    %v1294 = vadd.f32 0.0, %v1293
    %v1295 = vpop.f32.mrf.mxu0
    %1296 = vdwg.mxu0
    %v1297 = vadd.f32 %v1116, %v1205
    %v1298 = vadd.f32 %v1117, %v1207
    %v1299 = vadd.f32 %v1118, %v1248
    %v1300 = vadd.f32 %v1119, %v1250
    %v1301 = vadd.f32 %v1120, %v1291
    %v1302 = vadd.f32 %v1121, %v1209
    %v1303 = vadd.f32 %v1122, %v1211
    %v1304 = vadd.f32 %v1123, %v1252
    %v1305 = vadd.f32 %v1124, %v1254
    %v1306 = vadd.f32 %v1125, %v1294
    %s1307 = scalar_lea.vmem %s1, 56
    %v1308 = vld [vmem:[%s1307] sm:$0xf]
    %v1309 = vld [vmem:[%s1307 + $0x4] sm:$0xf]
    %v1312 = vunpack.c.l.b16 %v1308
    %v1313 = vunpack.c.l.b16 %v1309
    %v1314 = vpack.c.b16 %v1313, %v1312
    %1315 = vrot.lane.b32.xlu0 %v46, 91
    %v1316 = vpop.permute.xlu0 %1315
    %1317 = vrot.lane.b32.xlu0 %v54, 91
    %v1318 = vpop.permute.xlu0 %1317
    %1319 = vrot.lane.b32.xlu0 %v53, 91
    %v1320 = vpop.permute.xlu0 %1319
    %1321 = vrot.lane.b32.xlu0 %v55, 91
    %v1322 = vpop.permute.xlu0 %1321
    %1323 = vrot.lane.b32.xlu0 %v62, 91
    %v1324 = vpop.permute.xlu0 %1323
    %1325 = vrot.lane.b32.xlu0 %v228, 91
    %v1326 = vpop.permute.xlu0 %1325
    %vm1327 = vcmask 744448
    %v1328 = vsel %vm1327, %v1316, %v1318
    %v1329 = vsel %vm1327, %v1318, %v1320
    %v1330 = vsel %vm1327, %v1320, %v1322
    %v1331 = vsel %vm1327, %v1322, %v1324
    %v1332 = vsel %vm1327, %v1324, %v1326
    %v1334 = vsel %vm63, %v1314, 0
    %v1337 = vsel %vm67, %v1328, 0
    %v1340 = vsel %vm67, %v1329, 0
    %v1343 = vsel %vm67, %v1330, 0
    %v1346 = vsel %vm67, %v1331, 0
    %v1349 = vsel %vm67, %v1332, 0
    %1351 = vmatprep.subr.bf16.mxu0 0
    %1352 = vmatpush1.bf16.msra.mxu0 0
    %1353 = vmatprep.subr.bf16.mxu0 0
    %1354 = vmatpush1.bf16.msra.mxu0 0
    %1355 = vmatprep.subr.bf16.mxu0 0
    %1356 = vmatpush1.bf16.msra.mxu0 0
    %1357 = vmatprep.subr.bf16.mxu0 0
    %1358 = vmatpush1.bf16.msra.mxu0 0
    %1359 = vmatprep.subr.bf16.mxu0 0
    %1360 = vmatpush1.bf16.msra.mxu0 0
    %1361 = vmatprep.subr.bf16.mxu0 0
    %1362 = vmatpush1.bf16.msra.mxu0 0
    %1363 = vmatprep.subr.bf16.mxu0 0
    %1364 = vmatpush1.bf16.msra.mxu0 0
    %1365 = vmatprep.subr.bf16.mxu0 %v1340
    %1366 = vmatpush1.bf16.msra.mxu0 %v1337
    %1367 = vmatprep.subr.bf16.mxu0 0
    %1368 = vmatpush2.bf16.msra.mxu0 0
    %1369 = vmatprep.subr.bf16.mxu0 0
    %1370 = vmatpush2.bf16.msra.mxu0 0
    %1371 = vmatprep.subr.bf16.mxu0 0
    %1372 = vmatpush2.bf16.msra.mxu0 0
    %1373 = vmatprep.subr.bf16.mxu0 0
    %1374 = vmatpush2.bf16.msra.mxu0 0
    %1375 = vmatprep.subr.bf16.mxu0 0
    %1376 = vmatpush2.bf16.msra.mxu0 0
    %1377 = vmatprep.subr.bf16.mxu0 0
    %1378 = vmatpush2.bf16.msra.mxu0 0
    %1379 = vmatprep.subr.bf16.mxu0 0
    %1380 = vmatpush2.bf16.msra.mxu0 0
    %1381 = vmatprep.subr.bf16.mxu0 0
    %1382 = vmatpush2.bf16.msra.mxu0 0
    %1383 = vmatprep.mubr.bf16.mxu0 0
    %1384 = vmatmul.mubr.bf16.gmra.mxu0 %v1334
    %v1385 = vpop.f32.mrf.mxu0
    %v1386 = vadd.f32 0.0, %v1385
    %v1387 = vpop.f32.mrf.mxu0
    %v1388 = vadd.f32 0.0, %v1387
    %v1389 = vpop.f32.mrf.mxu0
    %v1390 = vadd.f32 0.0, %v1389
    %v1391 = vpop.f32.mrf.mxu0
    %v1392 = vadd.f32 0.0, %v1391
    %1393 = vdwg.mxu0
    %1394 = vmatprep.subr.bf16.mxu0 0
    %1395 = vmatpush1.bf16.msra.mxu0 0
    %1396 = vmatprep.subr.bf16.mxu0 0
    %1397 = vmatpush1.bf16.msra.mxu0 0
    %1398 = vmatprep.subr.bf16.mxu0 0
    %1399 = vmatpush1.bf16.msra.mxu0 0
    %1400 = vmatprep.subr.bf16.mxu0 0
    %1401 = vmatpush1.bf16.msra.mxu0 0
    %1402 = vmatprep.subr.bf16.mxu0 0
    %1403 = vmatpush1.bf16.msra.mxu0 0
    %1404 = vmatprep.subr.bf16.mxu0 0
    %1405 = vmatpush1.bf16.msra.mxu0 0
    %1406 = vmatprep.subr.bf16.mxu0 0
    %1407 = vmatpush1.bf16.msra.mxu0 0
    %1408 = vmatprep.subr.bf16.mxu0 %v1346
    %1409 = vmatpush1.bf16.msra.mxu0 %v1343
    %1410 = vmatprep.subr.bf16.mxu0 0
    %1411 = vmatpush2.bf16.msra.mxu0 0
    %1412 = vmatprep.subr.bf16.mxu0 0
    %1413 = vmatpush2.bf16.msra.mxu0 0
    %1414 = vmatprep.subr.bf16.mxu0 0
    %1415 = vmatpush2.bf16.msra.mxu0 0
    %1416 = vmatprep.subr.bf16.mxu0 0
    %1417 = vmatpush2.bf16.msra.mxu0 0
    %1418 = vmatprep.subr.bf16.mxu0 0
    %1419 = vmatpush2.bf16.msra.mxu0 0
    %1420 = vmatprep.subr.bf16.mxu0 0
    %1421 = vmatpush2.bf16.msra.mxu0 0
    %1422 = vmatprep.subr.bf16.mxu0 0
    %1423 = vmatpush2.bf16.msra.mxu0 0
    %1424 = vmatprep.subr.bf16.mxu0 0
    %1425 = vmatpush2.bf16.msra.mxu0 0
    %1426 = vmatprep.mubr.bf16.mxu0 0
    %1427 = vmatmul.mubr.bf16.gmra.mxu0 %v1334
    %v1428 = vpop.f32.mrf.mxu0
    %v1429 = vadd.f32 0.0, %v1428
    %v1430 = vpop.f32.mrf.mxu0
    %v1431 = vadd.f32 0.0, %v1430
    %v1432 = vpop.f32.mrf.mxu0
    %v1433 = vadd.f32 0.0, %v1432
    %v1434 = vpop.f32.mrf.mxu0
    %v1435 = vadd.f32 0.0, %v1434
    %1436 = vdwg.mxu0
    %1437 = vmatprep.subr.bf16.mxu0 0
    %1438 = vmatpush1.bf16.msra.mxu0 0
    %1439 = vmatprep.subr.bf16.mxu0 0
    %1440 = vmatpush1.bf16.msra.mxu0 0
    %1441 = vmatprep.subr.bf16.mxu0 0
    %1442 = vmatpush1.bf16.msra.mxu0 0
    %1443 = vmatprep.subr.bf16.mxu0 0
    %1444 = vmatpush1.bf16.msra.mxu0 0
    %1445 = vmatprep.subr.bf16.mxu0 0
    %1446 = vmatpush1.bf16.msra.mxu0 0
    %1447 = vmatprep.subr.bf16.mxu0 0
    %1448 = vmatpush1.bf16.msra.mxu0 0
    %1449 = vmatprep.subr.bf16.mxu0 0
    %1450 = vmatpush1.bf16.msra.mxu0 0
    %1451 = vmatprep.subr.bf16.mxu0 0
    %1452 = vmatpush1.bf16.msra.mxu0 %v1349
    %1453 = vmatprep.subr.bf16.mxu0 0
    %1454 = vmatpush2.bf16.msra.mxu0 0
    %1455 = vmatprep.subr.bf16.mxu0 0
    %1456 = vmatpush2.bf16.msra.mxu0 0
    %1457 = vmatprep.subr.bf16.mxu0 0
    %1458 = vmatpush2.bf16.msra.mxu0 0
    %1459 = vmatprep.subr.bf16.mxu0 0
    %1460 = vmatpush2.bf16.msra.mxu0 0
    %1461 = vmatprep.subr.bf16.mxu0 0
    %1462 = vmatpush2.bf16.msra.mxu0 0
    %1463 = vmatprep.subr.bf16.mxu0 0
    %1464 = vmatpush2.bf16.msra.mxu0 0
    %1465 = vmatprep.subr.bf16.mxu0 0
    %1466 = vmatpush2.bf16.msra.mxu0 0
    %1467 = vmatprep.subr.bf16.mxu0 0
    %1468 = vmatpush2.bf16.msra.mxu0 0
    %1469 = vmatprep.mubr.bf16.mxu0 0
    %1470 = vmatmul.mubr.bf16.gmra.mxu0 %v1334
    %v1471 = vpop.f32.mrf.mxu0
    %v1472 = vadd.f32 0.0, %v1471
    %v1473 = vpop.f32.mrf.mxu0
    %v1474 = vpop.f32.mrf.mxu0
    %v1475 = vadd.f32 0.0, %v1474
    %v1476 = vpop.f32.mrf.mxu0
    %1477 = vdwg.mxu0
    %v1478 = vadd.f32 %v1297, %v1386
    %v1479 = vadd.f32 %v1298, %v1388
    %v1480 = vadd.f32 %v1299, %v1429
    %v1481 = vadd.f32 %v1300, %v1431
    %v1482 = vadd.f32 %v1301, %v1472
    %v1483 = vadd.f32 %v1302, %v1390
    %v1484 = vadd.f32 %v1303, %v1392
    %v1485 = vadd.f32 %v1304, %v1433
    %v1486 = vadd.f32 %v1305, %v1435
    %v1487 = vadd.f32 %v1306, %v1475
    %s1488 = scalar_lea.vmem %s1, 64
    %v1489 = vld [vmem:[%s1488] sm:$0xf]
    %v1490 = vld [vmem:[%s1488 + $0x4] sm:$0xf]
    %v1493 = vunpack.c.l.b16 %v1489
    %v1494 = vunpack.c.l.b16 %v1490
    %v1495 = vpack.c.b16 %v1494, %v1493
    %1496 = vrot.lane.b32.xlu0 %v46, 90
    %v1497 = vpop.permute.xlu0 %1496
    %1498 = vrot.lane.b32.xlu0 %v54, 90
    %v1499 = vpop.permute.xlu0 %1498
    %1500 = vrot.lane.b32.xlu0 %v53, 90
    %v1501 = vpop.permute.xlu0 %1500
    %1502 = vrot.lane.b32.xlu0 %v55, 90
    %v1503 = vpop.permute.xlu0 %1502
    %1504 = vrot.lane.b32.xlu0 %v62, 90
    %v1505 = vpop.permute.xlu0 %1504
    %1506 = vrot.lane.b32.xlu0 %v228, 90
    %v1507 = vpop.permute.xlu0 %1506
    %vm1508 = vcmask 736256
    %v1509 = vsel %vm1508, %v1497, %v1499
    %v1510 = vsel %vm1508, %v1499, %v1501
    %v1511 = vsel %vm1508, %v1501, %v1503
    %v1512 = vsel %vm1508, %v1503, %v1505
    %v1513 = vsel %vm1508, %v1505, %v1507
    %v1515 = vsel %vm63, %v1495, 0
    %v1518 = vsel %vm67, %v1509, 0
    %v1521 = vsel %vm67, %v1510, 0
    %v1524 = vsel %vm67, %v1511, 0
    %v1527 = vsel %vm67, %v1512, 0
    %v1530 = vsel %vm67, %v1513, 0
    %1532 = vmatprep.subr.bf16.mxu0 0
    %1533 = vmatpush1.bf16.msra.mxu0 0
    %1534 = vmatprep.subr.bf16.mxu0 0
    %1535 = vmatpush1.bf16.msra.mxu0 0
    %1536 = vmatprep.subr.bf16.mxu0 0
    %1537 = vmatpush1.bf16.msra.mxu0 0
    %1538 = vmatprep.subr.bf16.mxu0 0
    %1539 = vmatpush1.bf16.msra.mxu0 0
    %1540 = vmatprep.subr.bf16.mxu0 0
    %1541 = vmatpush1.bf16.msra.mxu0 0
    %1542 = vmatprep.subr.bf16.mxu0 0
    %1543 = vmatpush1.bf16.msra.mxu0 0
    %1544 = vmatprep.subr.bf16.mxu0 0
    %1545 = vmatpush1.bf16.msra.mxu0 0
    %1546 = vmatprep.subr.bf16.mxu0 %v1521
    %1547 = vmatpush1.bf16.msra.mxu0 %v1518
    %1548 = vmatprep.subr.bf16.mxu0 0
    %1549 = vmatpush2.bf16.msra.mxu0 0
    %1550 = vmatprep.subr.bf16.mxu0 0
    %1551 = vmatpush2.bf16.msra.mxu0 0
    %1552 = vmatprep.subr.bf16.mxu0 0
    %1553 = vmatpush2.bf16.msra.mxu0 0
    %1554 = vmatprep.subr.bf16.mxu0 0
    %1555 = vmatpush2.bf16.msra.mxu0 0
    %1556 = vmatprep.subr.bf16.mxu0 0
    %1557 = vmatpush2.bf16.msra.mxu0 0
    %1558 = vmatprep.subr.bf16.mxu0 0
    %1559 = vmatpush2.bf16.msra.mxu0 0
    %1560 = vmatprep.subr.bf16.mxu0 0
    %1561 = vmatpush2.bf16.msra.mxu0 0
    %1562 = vmatprep.subr.bf16.mxu0 0
    %1563 = vmatpush2.bf16.msra.mxu0 0
    %1564 = vmatprep.mubr.bf16.mxu0 0
    %1565 = vmatmul.mubr.bf16.gmra.mxu0 %v1515
    %v1566 = vpop.f32.mrf.mxu0
    %v1567 = vadd.f32 0.0, %v1566
    %v1568 = vpop.f32.mrf.mxu0
    %v1569 = vadd.f32 0.0, %v1568
    %v1570 = vpop.f32.mrf.mxu0
    %v1571 = vadd.f32 0.0, %v1570
    %v1572 = vpop.f32.mrf.mxu0
    %v1573 = vadd.f32 0.0, %v1572
    %1574 = vdwg.mxu0
    %1575 = vmatprep.subr.bf16.mxu0 0
    %1576 = vmatpush1.bf16.msra.mxu0 0
    %1577 = vmatprep.subr.bf16.mxu0 0
    %1578 = vmatpush1.bf16.msra.mxu0 0
    %1579 = vmatprep.subr.bf16.mxu0 0
    %1580 = vmatpush1.bf16.msra.mxu0 0
    %1581 = vmatprep.subr.bf16.mxu0 0
    %1582 = vmatpush1.bf16.msra.mxu0 0
    %1583 = vmatprep.subr.bf16.mxu0 0
    %1584 = vmatpush1.bf16.msra.mxu0 0
    %1585 = vmatprep.subr.bf16.mxu0 0
    %1586 = vmatpush1.bf16.msra.mxu0 0
    %1587 = vmatprep.subr.bf16.mxu0 0
    %1588 = vmatpush1.bf16.msra.mxu0 0
    %1589 = vmatprep.subr.bf16.mxu0 %v1527
    %1590 = vmatpush1.bf16.msra.mxu0 %v1524
    %1591 = vmatprep.subr.bf16.mxu0 0
    %1592 = vmatpush2.bf16.msra.mxu0 0
    %1593 = vmatprep.subr.bf16.mxu0 0
    %1594 = vmatpush2.bf16.msra.mxu0 0
    %1595 = vmatprep.subr.bf16.mxu0 0
    %1596 = vmatpush2.bf16.msra.mxu0 0
    %1597 = vmatprep.subr.bf16.mxu0 0
    %1598 = vmatpush2.bf16.msra.mxu0 0
    %1599 = vmatprep.subr.bf16.mxu0 0
    %1600 = vmatpush2.bf16.msra.mxu0 0
    %1601 = vmatprep.subr.bf16.mxu0 0
    %1602 = vmatpush2.bf16.msra.mxu0 0
    %1603 = vmatprep.subr.bf16.mxu0 0
    %1604 = vmatpush2.bf16.msra.mxu0 0
    %1605 = vmatprep.subr.bf16.mxu0 0
    %1606 = vmatpush2.bf16.msra.mxu0 0
    %1607 = vmatprep.mubr.bf16.mxu0 0
    %1608 = vmatmul.mubr.bf16.gmra.mxu0 %v1515
    %v1609 = vpop.f32.mrf.mxu0
    %v1610 = vadd.f32 0.0, %v1609
    %v1611 = vpop.f32.mrf.mxu0
    %v1612 = vadd.f32 0.0, %v1611
    %v1613 = vpop.f32.mrf.mxu0
    %v1614 = vadd.f32 0.0, %v1613
    %v1615 = vpop.f32.mrf.mxu0
    %v1616 = vadd.f32 0.0, %v1615
    %1617 = vdwg.mxu0
    %1618 = vmatprep.subr.bf16.mxu0 0
    %1619 = vmatpush1.bf16.msra.mxu0 0
    %1620 = vmatprep.subr.bf16.mxu0 0
    %1621 = vmatpush1.bf16.msra.mxu0 0
    %1622 = vmatprep.subr.bf16.mxu0 0
    %1623 = vmatpush1.bf16.msra.mxu0 0
    %1624 = vmatprep.subr.bf16.mxu0 0
    %1625 = vmatpush1.bf16.msra.mxu0 0
    %1626 = vmatprep.subr.bf16.mxu0 0
    %1627 = vmatpush1.bf16.msra.mxu0 0
    %1628 = vmatprep.subr.bf16.mxu0 0
    %1629 = vmatpush1.bf16.msra.mxu0 0
    %1630 = vmatprep.subr.bf16.mxu0 0
    %1631 = vmatpush1.bf16.msra.mxu0 0
    %1632 = vmatprep.subr.bf16.mxu0 0
    %1633 = vmatpush1.bf16.msra.mxu0 %v1530
    %1634 = vmatprep.subr.bf16.mxu0 0
    %1635 = vmatpush2.bf16.msra.mxu0 0
    %1636 = vmatprep.subr.bf16.mxu0 0
    %1637 = vmatpush2.bf16.msra.mxu0 0
    %1638 = vmatprep.subr.bf16.mxu0 0
    %1639 = vmatpush2.bf16.msra.mxu0 0
    %1640 = vmatprep.subr.bf16.mxu0 0
    %1641 = vmatpush2.bf16.msra.mxu0 0
    %1642 = vmatprep.subr.bf16.mxu0 0
    %1643 = vmatpush2.bf16.msra.mxu0 0
    %1644 = vmatprep.subr.bf16.mxu0 0
    %1645 = vmatpush2.bf16.msra.mxu0 0
    %1646 = vmatprep.subr.bf16.mxu0 0
    %1647 = vmatpush2.bf16.msra.mxu0 0
    %1648 = vmatprep.subr.bf16.mxu0 0
    %1649 = vmatpush2.bf16.msra.mxu0 0
    %1650 = vmatprep.mubr.bf16.mxu0 0
    %1651 = vmatmul.mubr.bf16.gmra.mxu0 %v1515
    %v1652 = vpop.f32.mrf.mxu0
    %v1653 = vadd.f32 0.0, %v1652
    %v1654 = vpop.f32.mrf.mxu0
    %v1655 = vpop.f32.mrf.mxu0
    %v1656 = vadd.f32 0.0, %v1655
    %v1657 = vpop.f32.mrf.mxu0
    %1658 = vdwg.mxu0
    %v1659 = vadd.f32 %v1478, %v1567
    %v1660 = vadd.f32 %v1479, %v1569
    %v1661 = vadd.f32 %v1480, %v1610
    %v1662 = vadd.f32 %v1481, %v1612
    %v1663 = vadd.f32 %v1482, %v1653
    %v1664 = vadd.f32 %v1483, %v1571
    %v1665 = vadd.f32 %v1484, %v1573
    %v1666 = vadd.f32 %v1485, %v1614
    %v1667 = vadd.f32 %v1486, %v1616
    %v1668 = vadd.f32 %v1487, %v1656
    %1669 = vst [vmem:[#allocation2] sm:$0xff] %v1659
    %1670 = vst [vmem:[#allocation2 + $0x8] sm:$0xff] %v1660
    %1671 = vst [vmem:[#allocation2 + $0x10] sm:$0xff] %v1661
    %1672 = vst [vmem:[#allocation2 + $0x18] sm:$0xff] %v1662
    %1673 = vst [vmem:[#allocation2 + $0x20] sm:$0xff] %v1663
    %1674 = vst [vmem:[#allocation2 + $0x28] sm:$0xff] %v1664
    %1675 = vst [vmem:[#allocation2 + $0x30] sm:$0xff] %v1665
    %1676 = vst [vmem:[#allocation2 + $0x38] sm:$0xff] %v1666
    %1677 = vst [vmem:[#allocation2 + $0x40] sm:$0xff] %v1667
    %1678 = vst [vmem:[#allocation2 + $0x48] sm:$0xff] %v1668
    // Predicated region
    $region14: #{tpu_custom_call.1} parent=1 // pred_check
      _
    $region15: #{tpu_custom_call.1} parent=1 // pred_check_branch
      %1680 = sbr.rel (0) target = $region17
    $region16: #{tpu_custom_call.1} parent=1 // pred_region
      %s1682 = ssub.s32 1280, 1280
      %1683 = vsyncadd [#allocation3], %s1682
      %s1684 = sshll.u32 [#allocation2], 4
      %s1685 = int_to_ptr.vmem [resolvable:$true] %s1684
      %1690 = dma.vmem_to_hbm [thread:$0]  %s1685, 1280, %s3, [#allocation3], 640, 640, 40
    $region17: #{tpu_custom_call.1} parent=1 // pred_fallthru
      _
    // Predicated region
    $region18: #{tpu_custom_call.1} parent=1 // pred_check
      _
    $region19: #{tpu_custom_call.1} parent=1 // pred_check_branch
      %1692 = sbr.rel (0) target = $region21
    $region20: #{tpu_custom_call.1} parent=1 // pred_region
      %1693 = dma.done [#allocation3], 1280
    $region21: #{tpu_custom_call.1} parent=1 // pred_fallthru
      _
    %1694 = vsyncpa [#allocation3], 1

</llo_original>
